<compile_context>
chip_gen: v7x
topology: tpu7x:2x2x1
jax: 0.10.0
libtpu: 0.0.40
codegen_flags: <defaults>
</compile_context>

<pallas_src>
import functools

import jax
import jax.numpy as jnp
from jax import lax
from jax.experimental import pallas as pl
from jax.experimental.pallas import tpu as pltpu


def _vmem_capacity_bytes():
    try:
        return int(pltpu.get_tpu_info().vmem_capacity_bytes)
    except Exception:
        return 128 << 20  # v5e/v6e; v7x reports 64 MiB per TensorCore when queryable


def _fused_conv_kernel(xm_ref, xh_ref, w_ref, b_ref, o_ref, *, C, Wo, T):
    """One (batch, row-tile) grid step of the LoRA-fused stride-2 3x3 conv.

    xm_ref: (T, Wo+1, 4C)   space-to-depth row-pairs [a, a+T)
    xh_ref: (1, Wo+1, 4C)   halo row-pair a+T (kh=2 taps of the tile's last row)
    w_ref : (9C, O_pad)     packed per-tap weights (see wrapper for ordering)
    b_ref : (1, O_pad)
    o_ref : (T*Wo, O_pad)
    Lane chunks of 4C: [row-even|col-even, row-even|col-odd,
                        row-odd|col-even,  row-odd|col-odd], each of width C.
    """
    xm = xm_ref[...]
    xh = xh_ref[...]
    # Row-pair "+1" view: rows 1..T-1 of the main band plus the halo row.
    xs = xh if T == 1 else jnp.concatenate([xm[1:], xh], axis=0)

    def mm(lhs3, lo, hi):
        lhs = lhs3.reshape(T * Wo, lhs3.shape[-1])
        return jnp.dot(lhs, w_ref[lo:hi, :], preferred_element_type=jnp.float32)

    # taps (0,0),(0,1),(1,0),(1,1): same super-pixel, full 4C lanes.
    acc = mm(xm[:, 0:Wo, :], 0, 4 * C)
    # taps (0,2),(1,2): col-pair +1, even-column chunks (lanes [0:C], [2C:3C]).
    acc += mm(xm[:, 1:Wo + 1, 0:C], 4 * C, 5 * C)
    acc += mm(xm[:, 1:Wo + 1, 2 * C:3 * C], 5 * C, 6 * C)
    # taps (2,0),(2,1): row-pair +1, even-row chunks (lanes [0:2C]).
    acc += mm(xs[:, 0:Wo, 0:2 * C], 6 * C, 8 * C)
    # tap (2,2): row-pair +1 and col-pair +1, lanes [0:C].
    acc += mm(xs[:, 1:Wo + 1, 0:C], 8 * C, 9 * C)

    o_ref[...] = (acc + b_ref[...]).astype(o_ref.dtype)


def timestep_embed_downsample(x_nchw, weight, bias, up, down, emb=None, context=None,
                              *, stride=2, padding=1, use_bf16=False):
    """x: (N,C,H,W) f32, weight: (O,C,3,3), bias: (O,), up: (O,r,1,1), down: (r,C,3,3)."""
    del emb, context  # unused by the module's forward, kept for signature parity
    N, C, H, W = x_nchw.shape
    O, Ci, KH, KW = weight.shape
    assert Ci == C and KH == 3 and KW == 3 and stride == 2
    rank = up.shape[1]

    Ho = (H + 2 * padding - KH) // stride + 1
    Wo = (W + 2 * padding - KW) // stride + 1

    LANE = 128
    O_pad = -(-O // LANE) * LANE
    in_dtype = jnp.bfloat16 if use_bf16 else x_nchw.dtype
    esz_in = jnp.dtype(in_dtype).itemsize
    C4 = 4 * C

    # ---- tile-row selection with a generation-aware VMEM budget ----
    cap = _vmem_capacity_bytes()
    budget = (cap * 3) // 4  # leave headroom for Mosaic internal scratch

    def vmem_need(t):
        band = t * (Wo + 1) * C4 * esz_in
        halo = (Wo + 1) * C4 * esz_in
        wgt = 9 * C * O_pad * esz_in          # single-buffered resident
        outb = t * Wo * O_pad * 4
        scratch = 3 * band + 2 * outb         # xs copy, LHS slice copies, f32 acc
        return 2 * band + 2 * halo + wgt + O_pad * 4 + 2 * outb + scratch

    TARGET_M = 1024                           # matmul rows per grid step
    T = max(1, min(Ho, TARGET_M // max(Wo, 1)))
    while T > 1 and vmem_need(T) > budget:
        T = max(1, T // 2)
    num_j = -(-Ho // T)
    Ho_pad = num_j * T
    vmem_limit = int(min(budget, max(32 << 20, vmem_need(T) + (6 << 20))))

    # ---- glue: NCHW -> NHWC -> zero-pad -> 2x2 space-to-depth (one rearrangement) ----
    x = jnp.transpose(x_nchw, (0, 2, 3, 1))                       # (N, H, W, C)
    Hp2, Wp2 = 2 * (Ho_pad + 1), 2 * (Wo + 1)
    xp = jnp.pad(x, ((0, 0),
                     (padding, Hp2 - H - padding),
                     (padding, Wp2 - W - padding),
                     (0, 0)))
    x_r = xp.reshape(N, Ho_pad + 1, 2, Wo + 1, 2, C)
    x_r = jnp.transpose(x_r, (0, 1, 3, 2, 4, 5)).reshape(N, Ho_pad + 1, Wo + 1, C4)
    x_r = x_r.astype(in_dtype)

    # ---- LoRA fusion + per-tap weight repack (tiny; plain XLA, no extra kernel) ----
    w_eff = weight + (up.reshape(O, rank) @ down.reshape(rank, C * 9)).reshape(O, C, 3, 3)
    taps = jnp.transpose(w_eff, (2, 3, 1, 0))                     # taps[kh, kw] = (C, O)
    order = ((0, 0), (0, 1), (1, 0), (1, 1), (0, 2), (1, 2), (2, 0), (2, 1), (2, 2))
    w_pack = jnp.concatenate([taps[kh, kw] for kh, kw in order], axis=0)   # (9C, O)
    w_pack = jnp.pad(w_pack, ((0, 0), (0, O_pad - O))).astype(in_dtype)
    bias2d = jnp.pad(bias.reshape(1, O), ((0, 0), (0, O_pad - O))).astype(jnp.float32)

    kern = functools.partial(_fused_conv_kernel, C=C, Wo=Wo, T=T)
    M_rows = N * Ho_pad * Wo
    out_sds = jax.ShapeDtypeStruct((M_rows, O_pad), jnp.float32)

    cost = pl.CostEstimate(
        flops=2 * M_rows * 9 * C * O_pad,
        transcendentals=0,
        bytes_accessed=x_r.size * esz_in + w_pack.size * esz_in
        + bias2d.size * 4 + M_rows * O_pad * 4,
    )

    def _make_specs(single_buffer_residents):
        def resident(shape):
            if single_buffer_residents:
                return pl.BlockSpec(shape, lambda n, j: (0, 0),
                                    pipeline_mode=pl.Buffered(1))
            return pl.BlockSpec(shape, lambda n, j: (0, 0))

        in_specs = [
            pl.BlockSpec((None, T, Wo + 1, C4), lambda n, j: (n, j, 0, 0)),
            pl.BlockSpec((None, 1, Wo + 1, C4), lambda n, j: (n, (j + 1) * T, 0, 0)),
            resident((9 * C, O_pad)),
            resident((1, O_pad)),
        ]
        out_specs = pl.BlockSpec((T * Wo, O_pad), lambda n, j: (n * num_j + j, 0))
        return in_specs, out_specs

    def _run(single_buffer_residents):
        in_specs, out_specs = _make_specs(single_buffer_residents)
        return pl.pallas_call(
            kern,
            out_shape=out_sds,
            grid_spec=pltpu.PrefetchScalarGridSpec(
                num_scalar_prefetch=0,
                grid=(N, num_j),
                in_specs=in_specs,
                out_specs=out_specs,
            ),
            compiler_params=pltpu.CompilerParams(
                # TODO(synk): on v7x use pltpu.CORE_PARALLEL on the row-tile axis to
                # shard tiles across its two TensorCores.
                dimension_semantics=("parallel", "parallel"),
                vmem_limit_bytes=vmem_limit,
            ),
            cost_estimate=cost,
        )(x_r, x_r, w_pack, bias2d)

    try:
        out_flat = _run(True)
    except Exception:
        # pipeline_mode / pl.Buffered(1) not supported by this JAX version:
        # fall back to default (double-buffered) residents.
        out_flat = _run(False)

    # (M_rows, O_pad) -> strip padding -> (N, Ho, Wo, O) -> NCHW.
    out = out_flat.reshape(N, Ho_pad, Wo, O_pad)[:, :Ho, :, :O]
    # TODO(synk): a fused NHWC consumer could skip this final transpose.
    return jnp.transpose(out, (0, 3, 1, 2))


def _reference(x_nchw, weight, bias, up, down, *, stride=2, padding=1):
    O, C, KH, KW = weight.shape
    rank = up.shape[1]
    w_eff = weight + (up.reshape(O, rank) @ down.reshape(rank, C * KH * KW)).reshape(
        weight.shape
    )
    y = lax.conv_general_dilated(
        x_nchw, w_eff,
        window_strides=(stride, stride),
        padding=((padding, padding), (padding, padding)),
        dimension_numbers=("NCHW", "OIHW", "NCHW"),
    )
    return y + bias.reshape(1, O, 1, 1)


if __name__ == "__main__":
    key = jax.random.PRNGKey(0)
    k_x, k_w, k_b, k_u, k_d = jax.random.split(key, 5)

    N, C, H, W = 2, 4, 16, 16
    O = 8
    RANK = 128

    x = jax.random.normal(k_x, (N, C, H, W), dtype=jnp.float32)
    weight = 0.05 * jax.random.normal(k_w, (O, C, 3, 3), dtype=jnp.float32)
    bias = 0.1 * jax.random.normal(k_b, (O,), dtype=jnp.float32)
    up = 0.05 * jax.random.normal(k_u, (O, RANK, 1, 1), dtype=jnp.float32)
    down = 0.05 * jax.random.normal(k_d, (RANK, C, 3, 3), dtype=jnp.float32)

    # emb / context are accepted but unused by the module's forward pass.
    out = timestep_embed_downsample(x, weight, bias, up, down)
    out = jax.block_until_ready(out)

    ref = _reference(x, weight, bias, up, down)
    assert out.shape == (N, O, H // 2, W // 2), out.shape
    err = float(jnp.max(jnp.abs(out - ref)))
    assert jnp.allclose(out, ref, atol=1e-4, rtol=1e-4), err

    print("KERNEL_OK")
</pallas_src>

<mosaic_0001>
module attributes {stable_mosaic.version = 11 : i64} {
  func.func @_fused_conv_kernel(%arg0: i32, %arg1: i32, %arg2: memref<1x8x9x16xf32, #tpu.memory_space<vmem>>, %arg3: memref<1x1x9x16xf32, #tpu.memory_space<vmem>>, %arg4: memref<36x128xf32, #tpu.memory_space<vmem>>, %arg5: memref<1x128xf32, #tpu.memory_space<vmem>>, %arg6: memref<64x128xf32, #tpu.memory_space<vmem>>) attributes {dimension_semantics = [#tpu.dimension_semantics<parallel>, #tpu.dimension_semantics<parallel>], iteration_bounds = array<i64: 2, 1>, scalar_prefetch = 0 : i64, scratch_operands = 0 : i64, tpu.core_type = #tpu.core_type<tc>, window_params = [{transform_indices = @transform_0, window_bounds = array<i64: 1, 8, 9, 16>}, {transform_indices = @transform_1, window_bounds = array<i64: 1, 1, 9, 16>}, {pipeline_mode = #tpu.pipeline_mode<synchronous>, transform_indices = @transform_2, window_bounds = array<i64: 36, 128>}, {pipeline_mode = #tpu.pipeline_mode<synchronous>, transform_indices = @transform_3, window_bounds = array<i64: 1, 128>}, {transform_indices = @transform_4, window_bounds = array<i64: 64, 128>}]} {
    %c0 = arith.constant 0 : index
    %c0_0 = arith.constant 0 : index
    %c0_1 = arith.constant 0 : index
    %c0_2 = arith.constant 0 : index
    %0 = vector.load %arg2[%c0, %c0_0, %c0_1, %c0_2] : memref<1x8x9x16xf32, #tpu.memory_space<vmem>>, vector<1x8x9x16xf32>
    %1 = vector.shape_cast %0 : vector<1x8x9x16xf32> to vector<8x9x16xf32>
    %c0_3 = arith.constant 0 : index
    %c0_4 = arith.constant 0 : index
    %c0_5 = arith.constant 0 : index
    %c0_6 = arith.constant 0 : index
    %2 = vector.load %arg3[%c0_3, %c0_4, %c0_5, %c0_6] : memref<1x1x9x16xf32, #tpu.memory_space<vmem>>, vector<1x1x9x16xf32>
    %3 = vector.shape_cast %2 : vector<1x1x9x16xf32> to vector<1x9x16xf32>
    %4 = vector.extract_strided_slice %1 {offsets = [1, 0, 0], sizes = [7, 9, 16], strides = [1, 1, 1]} : vector<8x9x16xf32> to vector<7x9x16xf32>
    %5 = tpu.concatenate %4, %3 in 0 : vector<7x9x16xf32>, vector<1x9x16xf32> -> vector<8x9x16xf32>
    %6 = vector.extract_strided_slice %1 {offsets = [0, 0, 0], sizes = [8, 8, 16], strides = [1, 1, 1]} : vector<8x9x16xf32> to vector<8x8x16xf32>
    %7 = vector.shape_cast %6 : vector<8x8x16xf32> to vector<64x16xf32>
    %c0_7 = arith.constant 0 : index
    %c0_8 = arith.constant 0 : index
    %8 = vector.load %arg4[%c0_7, %c0_8] : memref<36x128xf32, #tpu.memory_space<vmem>>, vector<16x128xf32>
    %cst = arith.constant dense<0.000000e+00> : vector<64x128xf32>
    %9 = tpu.matmul %7, %8, %cst {dimension_numbers = #tpu.dot_dimension_numbers<[1], [0], [0], [1], [0, 0, 1, 1], [], []>} : vector<64x16xf32>, vector<16x128xf32>, vector<64x128xf32> -> vector<64x128xf32>
    %10 = vector.extract_strided_slice %1 {offsets = [0, 1, 0], sizes = [8, 8, 4], strides = [1, 1, 1]} : vector<8x9x16xf32> to vector<8x8x4xf32>
    %11 = vector.shape_cast %10 : vector<8x8x4xf32> to vector<64x4xf32>
    %c16 = arith.constant 16 : index
    %c0_9 = arith.constant 0 : index
    %12 = vector.load %arg4[%c16, %c0_9] : memref<36x128xf32, #tpu.memory_space<vmem>>, vector<4x128xf32>
    %cst_10 = arith.constant dense<0.000000e+00> : vector<64x128xf32>
    %13 = tpu.matmul %11, %12, %cst_10 {dimension_numbers = #tpu.dot_dimension_numbers<[1], [0], [0], [1], [0, 0, 1, 1], [], []>} : vector<64x4xf32>, vector<4x128xf32>, vector<64x128xf32> -> vector<64x128xf32>
    %14 = arith.addf %9, %13 : vector<64x128xf32>
    %15 = vector.extract_strided_slice %1 {offsets = [0, 1, 8], sizes = [8, 8, 4], strides = [1, 1, 1]} : vector<8x9x16xf32> to vector<8x8x4xf32>
    %16 = vector.shape_cast %15 : vector<8x8x4xf32> to vector<64x4xf32>
    %c20 = arith.constant 20 : index
    %c0_11 = arith.constant 0 : index
    %17 = vector.load %arg4[%c20, %c0_11] : memref<36x128xf32, #tpu.memory_space<vmem>>, vector<4x128xf32>
    %cst_12 = arith.constant dense<0.000000e+00> : vector<64x128xf32>
    %18 = tpu.matmul %16, %17, %cst_12 {dimension_numbers = #tpu.dot_dimension_numbers<[1], [0], [0], [1], [0, 0, 1, 1], [], []>} : vector<64x4xf32>, vector<4x128xf32>, vector<64x128xf32> -> vector<64x128xf32>
    %19 = arith.addf %14, %18 : vector<64x128xf32>
    %20 = vector.extract_strided_slice %5 {offsets = [0, 0, 0], sizes = [8, 8, 8], strides = [1, 1, 1]} : vector<8x9x16xf32> to vector<8x8x8xf32>
    %21 = vector.shape_cast %20 : vector<8x8x8xf32> to vector<64x8xf32>
    %c24 = arith.constant 24 : index
    %c0_13 = arith.constant 0 : index
    %22 = vector.load %arg4[%c24, %c0_13] : memref<36x128xf32, #tpu.memory_space<vmem>>, vector<8x128xf32>
    %cst_14 = arith.constant dense<0.000000e+00> : vector<64x128xf32>
    %23 = tpu.matmul %21, %22, %cst_14 {dimension_numbers = #tpu.dot_dimension_numbers<[1], [0], [0], [1], [0, 0, 1, 1], [], []>} : vector<64x8xf32>, vector<8x128xf32>, vector<64x128xf32> -> vector<64x128xf32>
    %24 = arith.addf %19, %23 : vector<64x128xf32>
    %25 = vector.extract_strided_slice %5 {offsets = [0, 1, 0], sizes = [8, 8, 4], strides = [1, 1, 1]} : vector<8x9x16xf32> to vector<8x8x4xf32>
    %26 = vector.shape_cast %25 : vector<8x8x4xf32> to vector<64x4xf32>
    %c32 = arith.constant 32 : index
    %c0_15 = arith.constant 0 : index
    %27 = vector.load %arg4[%c32, %c0_15] : memref<36x128xf32, #tpu.memory_space<vmem>>, vector<4x128xf32>
    %cst_16 = arith.constant dense<0.000000e+00> : vector<64x128xf32>
    %28 = tpu.matmul %26, %27, %cst_16 {dimension_numbers = #tpu.dot_dimension_numbers<[1], [0], [0], [1], [0, 0, 1, 1], [], []>} : vector<64x4xf32>, vector<4x128xf32>, vector<64x128xf32> -> vector<64x128xf32>
    %29 = arith.addf %24, %28 : vector<64x128xf32>
    %c0_17 = arith.constant 0 : index
    %c0_18 = arith.constant 0 : index
    %30 = vector.load %arg5[%c0_17, %c0_18] : memref<1x128xf32, #tpu.memory_space<vmem>>, vector<1x128xf32>
    %31 = vector.broadcast %30 : vector<1x128xf32> to vector<64x128xf32>
    %32 = arith.addf %29, %31 : vector<64x128xf32>
    %c0_19 = arith.constant 0 : index
    %c0_20 = arith.constant 0 : index
    %33 = vector.load %arg6[%c0_19, %c0_20] : memref<64x128xf32, #tpu.memory_space<vmem>>, vector<64x128xf32>
    tpu.vector_store %arg6[%c0_19, %c0_20], %32 {strides = array<i32>} : memref<64x128xf32, #tpu.memory_space<vmem>>, vector<64x128xf32>,
    return
  }
  func.func @transform_0(%arg0: i32, %arg1: i32) -> (i32, i32, i32, i32) {
    %c0_i32 = arith.constant 0 : i32
    %c0_i32_0 = arith.constant 0 : i32
    %c0_i32_1 = arith.constant 0 : i32
    return %arg0, %arg1, %c0_i32, %c0_i32_0 : i32, i32, i32, i32
  }
  func.func @transform_1(%arg0: i32, %arg1: i32) -> (i32, i32, i32, i32) {
    %c1_i32 = arith.constant 1 : i32
    %0 = arith.addi %arg1, %c1_i32 : i32
    %c8_i32 = arith.constant 8 : i32
    %1 = arith.muli %0, %c8_i32 : i32
    %c0_i32 = arith.constant 0 : i32
    %c0_i32_0 = arith.constant 0 : i32
    %c0_i32_1 = arith.constant 0 : i32
    return %arg0, %1, %c0_i32, %c0_i32_0 : i32, i32, i32, i32
  }
  func.func @transform_2(%arg0: i32, %arg1: i32) -> (i32, i32) {
    %c0_i32 = arith.constant 0 : i32
    %c0_i32_0 = arith.constant 0 : i32
    %c0_i32_1 = arith.constant 0 : i32
    return %c0_i32, %c0_i32_0 : i32, i32
  }
  func.func @transform_3(%arg0: i32, %arg1: i32) -> (i32, i32) {
    %c0_i32 = arith.constant 0 : i32
    %c0_i32_0 = arith.constant 0 : i32
    %c0_i32_1 = arith.constant 0 : i32
    return %c0_i32, %c0_i32_0 : i32, i32
  }
  func.func @transform_4(%arg0: i32, %arg1: i32) -> (i32, i32) {
    %c1_i32 = arith.constant 1 : i32
    %0 = arith.muli %arg0, %c1_i32 : i32
    %1 = arith.addi %0, %arg1 : i32
    %c0_i32 = arith.constant 0 : i32
    %c0_i32_0 = arith.constant 0 : i32
    return %1, %c0_i32 : i32, i32
  }
}

module attributes {stable_mosaic.version = 11 : i64} {
  func.func @_fused_conv_kernel(%arg0: i32, %arg1: i32, %arg2: memref<1x8x9x16xf32, #tpu.memory_space<vmem>>, %arg3: memref<1x1x9x16xf32, #tpu.memory_space<vmem>>, %arg4: memref<36x128xf32, #tpu.memory_space<vmem>>, %arg5: memref<1x128xf32, #tpu.memory_space<vmem>>, %arg6: memref<64x128xf32, #tpu.memory_space<vmem>>) attributes {dimension_semantics = [#tpu.dimension_semantics<parallel>, #tpu.dimension_semantics<parallel>], iteration_bounds = array<i64: 2, 1>, scalar_prefetch = 0 : i64, scratch_operands = 0 : i64, tpu.core_type = #tpu.core_type<tc>, window_params = [{transform_indices = @transform_0, window_bounds = array<i64: 1, 8, 9, 16>}, {transform_indices = @transform_1, window_bounds = array<i64: 1, 1, 9, 16>}, {pipeline_mode = #tpu.pipeline_mode<synchronous>, transform_indices = @transform_2, window_bounds = array<i64: 36, 128>}, {pipeline_mode = #tpu.pipeline_mode<synchronous>, transform_indices = @transform_3, window_bounds = array<i64: 1, 128>}, {transform_indices = @transform_4, window_bounds = array<i64: 64, 128>}]} {
    %c0 = arith.constant 0 : index
    %c0_0 = arith.constant 0 : index
    %c0_1 = arith.constant 0 : index
    %c0_2 = arith.constant 0 : index
    %0 = vector.load %arg2[%c0, %c0_0, %c0_1, %c0_2] : memref<1x8x9x16xf32, #tpu.memory_space<vmem>>, vector<1x8x9x16xf32>
    %1 = vector.shape_cast %0 : vector<1x8x9x16xf32> to vector<8x9x16xf32>
    %c0_3 = arith.constant 0 : index
    %c0_4 = arith.constant 0 : index
    %c0_5 = arith.constant 0 : index
    %c0_6 = arith.constant 0 : index
    %2 = vector.load %arg3[%c0_3, %c0_4, %c0_5, %c0_6] : memref<1x1x9x16xf32, #tpu.memory_space<vmem>>, vector<1x1x9x16xf32>
    %3 = vector.shape_cast %2 : vector<1x1x9x16xf32> to vector<1x9x16xf32>
    %4 = vector.extract_strided_slice %1 {offsets = [1, 0, 0], sizes = [7, 9, 16], strides = [1, 1, 1]} : vector<8x9x16xf32> to vector<7x9x16xf32>
    %5 = tpu.concatenate %4, %3 in 0 : vector<7x9x16xf32>, vector<1x9x16xf32> -> vector<8x9x16xf32>
    %6 = vector.extract_strided_slice %1 {offsets = [0, 0, 0], sizes = [8, 8, 16], strides = [1, 1, 1]} : vector<8x9x16xf32> to vector<8x8x16xf32>
    %7 = vector.shape_cast %6 : vector<8x8x16xf32> to vector<64x16xf32>
    %c0_7 = arith.constant 0 : index
    %c0_8 = arith.constant 0 : index
    %8 = vector.load %arg4[%c0_7, %c0_8] : memref<36x128xf32, #tpu.memory_space<vmem>>, vector<16x128xf32>
    %cst = arith.constant dense<0.000000e+00> : vector<64x128xf32>
    %9 = tpu.matmul %7, %8, %cst {dimension_numbers = #tpu.dot_dimension_numbers<[1], [0], [0], [1], [0, 0, 1, 1], [], []>} : vector<64x16xf32>, vector<16x128xf32>, vector<64x128xf32> -> vector<64x128xf32>
    %10 = vector.extract_strided_slice %1 {offsets = [0, 1, 0], sizes = [8, 8, 4], strides = [1, 1, 1]} : vector<8x9x16xf32> to vector<8x8x4xf32>
    %11 = vector.shape_cast %10 : vector<8x8x4xf32> to vector<64x4xf32>
    %c16 = arith.constant 16 : index
    %c0_9 = arith.constant 0 : index
    %12 = vector.load %arg4[%c16, %c0_9] : memref<36x128xf32, #tpu.memory_space<vmem>>, vector<4x128xf32>
    %cst_10 = arith.constant dense<0.000000e+00> : vector<64x128xf32>
    %13 = tpu.matmul %11, %12, %cst_10 {dimension_numbers = #tpu.dot_dimension_numbers<[1], [0], [0], [1], [0, 0, 1, 1], [], []>} : vector<64x4xf32>, vector<4x128xf32>, vector<64x128xf32> -> vector<64x128xf32>
    %14 = arith.addf %9, %13 : vector<64x128xf32>
    %15 = vector.extract_strided_slice %1 {offsets = [0, 1, 8], sizes = [8, 8, 4], strides = [1, 1, 1]} : vector<8x9x16xf32> to vector<8x8x4xf32>
    %16 = vector.shape_cast %15 : vector<8x8x4xf32> to vector<64x4xf32>
    %c20 = arith.constant 20 : index
    %c0_11 = arith.constant 0 : index
    %17 = vector.load %arg4[%c20, %c0_11] : memref<36x128xf32, #tpu.memory_space<vmem>>, vector<4x128xf32>
    %cst_12 = arith.constant dense<0.000000e+00> : vector<64x128xf32>
    %18 = tpu.matmul %16, %17, %cst_12 {dimension_numbers = #tpu.dot_dimension_numbers<[1], [0], [0], [1], [0, 0, 1, 1], [], []>} : vector<64x4xf32>, vector<4x128xf32>, vector<64x128xf32> -> vector<64x128xf32>
    %19 = arith.addf %14, %18 : vector<64x128xf32>
    %20 = vector.extract_strided_slice %5 {offsets = [0, 0, 0], sizes = [8, 8, 8], strides = [1, 1, 1]} : vector<8x9x16xf32> to vector<8x8x8xf32>
    %21 = vector.shape_cast %20 : vector<8x8x8xf32> to vector<64x8xf32>
    %c24 = arith.constant 24 : index
    %c0_13 = arith.constant 0 : index
    %22 = vector.load %arg4[%c24, %c0_13] : memref<36x128xf32, #tpu.memory_space<vmem>>, vector<8x128xf32>
    %cst_14 = arith.constant dense<0.000000e+00> : vector<64x128xf32>
    %23 = tpu.matmul %21, %22, %cst_14 {dimension_numbers = #tpu.dot_dimension_numbers<[1], [0], [0], [1], [0, 0, 1, 1], [], []>} : vector<64x8xf32>, vector<8x128xf32>, vector<64x128xf32> -> vector<64x128xf32>
    %24 = arith.addf %19, %23 : vector<64x128xf32>
    %25 = vector.extract_strided_slice %5 {offsets = [0, 1, 0], sizes = [8, 8, 4], strides = [1, 1, 1]} : vector<8x9x16xf32> to vector<8x8x4xf32>
    %26 = vector.shape_cast %25 : vector<8x8x4xf32> to vector<64x4xf32>
    %c32 = arith.constant 32 : index
    %c0_15 = arith.constant 0 : index
    %27 = vector.load %arg4[%c32, %c0_15] : memref<36x128xf32, #tpu.memory_space<vmem>>, vector<4x128xf32>
    %cst_16 = arith.constant dense<0.000000e+00> : vector<64x128xf32>
    %28 = tpu.matmul %26, %27, %cst_16 {dimension_numbers = #tpu.dot_dimension_numbers<[1], [0], [0], [1], [0, 0, 1, 1], [], []>} : vector<64x4xf32>, vector<4x128xf32>, vector<64x128xf32> -> vector<64x128xf32>
    %29 = arith.addf %24, %28 : vector<64x128xf32>
    %c0_17 = arith.constant 0 : index
    %c0_18 = arith.constant 0 : index
    %30 = vector.load %arg5[%c0_17, %c0_18] : memref<1x128xf32, #tpu.memory_space<vmem>>, vector<1x128xf32>
    %31 = vector.broadcast %30 : vector<1x128xf32> to vector<64x128xf32>
    %32 = arith.addf %29, %31 : vector<64x128xf32>
    %c0_19 = arith.constant 0 : index
    %c0_20 = arith.constant 0 : index
    %33 = vector.load %arg6[%c0_19, %c0_20] : memref<64x128xf32, #tpu.memory_space<vmem>>, vector<64x128xf32>
    tpu.vector_store %arg6[%c0_19, %c0_20], %32 {strides = array<i32>} : memref<64x128xf32, #tpu.memory_space<vmem>>, vector<64x128xf32>,
    return
  }
  func.func @transform_0(%arg0: i32, %arg1: i32) -> (i32, i32, i32, i32) {
    %c0_i32 = arith.constant 0 : i32
    %c0_i32_0 = arith.constant 0 : i32
    %c0_i32_1 = arith.constant 0 : i32
    return %arg0, %arg1, %c0_i32, %c0_i32_0 : i32, i32, i32, i32
  }
  func.func @transform_1(%arg0: i32, %arg1: i32) -> (i32, i32, i32, i32) {
    %c1_i32 = arith.constant 1 : i32
    %0 = arith.addi %arg1, %c1_i32 : i32
    %c8_i32 = arith.constant 8 : i32
    %1 = arith.muli %0, %c8_i32 : i32
    %c0_i32 = arith.constant 0 : i32
    %c0_i32_0 = arith.constant 0 : i32
    %c0_i32_1 = arith.constant 0 : i32
    return %arg0, %1, %c0_i32, %c0_i32_0 : i32, i32, i32, i32
  }
  func.func @transform_2(%arg0: i32, %arg1: i32) -> (i32, i32) {
    %c0_i32 = arith.constant 0 : i32
    %c0_i32_0 = arith.constant 0 : i32
    %c0_i32_1 = arith.constant 0 : i32
    return %c0_i32, %c0_i32_0 : i32, i32
  }
  func.func @transform_3(%arg0: i32, %arg1: i32) -> (i32, i32) {
    %c0_i32 = arith.constant 0 : i32
    %c0_i32_0 = arith.constant 0 : i32
    %c0_i32_1 = arith.constant 0 : i32
    return %c0_i32, %c0_i32_0 : i32, i32
  }
  func.func @transform_4(%arg0: i32, %arg1: i32) -> (i32, i32) {
    %c1_i32 = arith.constant 1 : i32
    %0 = arith.muli %arg0, %c1_i32 : i32
    %1 = arith.addi %0, %arg1 : i32
    %c0_i32 = arith.constant 0 : i32
    %c0_i32_0 = arith.constant 0 : i32
    return %1, %c0_i32 : i32, i32
  }
}

</mosaic_0001>

<llo_original>
// kernel: tpu_custom_call.1
$region0: #{tpu_custom_call.1}
  #allocation0 [shape = 'u32[]', space=smem, size = 0x4, offset = 0x4, fixed_abs, tag = 'smem constant byte address 0x4 - core index']
  #allocation1 [shape = 'u32[144,128]{1,0:T(1,128)}', space=vmem, size = 0x12000, scoped, tag = 'internal scratch']
  %s0 = inlined_call_operand.vmem [shape: f32[2,9,9,16], index: 0, kind: input, shape index: {}]
  %s1 = inlined_call_operand.vmem [shape: f32[2,9,9,16], index: 1, kind: input, shape index: {}]
  %s2 = inlined_call_operand.vmem [shape: f32[36,128], index: 2, kind: input, shape index: {}]
  %s3 = inlined_call_operand.vmem [shape: f32[1,128], index: 3, kind: input, shape index: {}]
  %s4 = inlined_call_operand.hbm [shape: f32[128,128], index: 4, kind: output, shape index: {}]
  %s5 = sld [smem:[#allocation0]]
  $region49: #{tpu_custom_call.1} parent=0
    _
  %s7 = ssub.s32 1, %s5
  %s8 = scalar_select 0, %s7, %s5
  $region1: #{tpu_custom_call.1} parent=0
    #allocation2 [shape = 'u8[65536]{0}', space=vmem, size = 0x10000, scoped, tag = 'output window, operand 0']
    #allocation3 [shape = 's32[2]{0}', space=sflag, size = 0x8, scoped, tag = 'scoped memory for tpu_custom_call.1']
    %9 = vsyncpa [#allocation3], 0
    %s10 = scalar_lea.sflag [#allocation3], 1
    %11 = vsyncpa %s10, 0
    loop: start=0, step=1, limit=4
    $region2: #{tpu_custom_call.1} parent=1 // loop_pre_header
      _
    $region3: #{tpu_custom_call.1} parent=1 // loop_header
      %s13 = sphi 0, %s17
      %p14 = scmp.ge.s32.totalorder %s13, 4
      %s20 = sphi 0, %s32
      %s21 = sphi 0, %s28
      %s22 = sphi 0, %s20
      %s23 = sphi 0, %s21
      %s24 = sphi 0, %s22
      %s25 = sphi 0, %s23
      %s37 = sphi 0, %s39
      %s40 = sphi 0, %s37
      %s41 = sphi 0, %s40
      %s57 = sphi 0, %s41
      %s69 = sphi 0, %s71
      %s72 = sphi 0, %s69
      %s73 = sphi 0, %s72
      %s89 = sphi 0, %s73
      %s93 = sphi 0, %s93
      %s95 = sphi 0, %s93
      %s96 = sphi 0, %s95
      %s110 = sphi 0, %s96
      %s114 = sphi 0, %s114
      %s116 = sphi 0, %s114
      %s117 = sphi 0, %s116
      %s131 = sphi 0, %s117
      %s139 = sphi 0, %s141
      %s142 = sphi 0, %s139
      %s143 = sphi 0, %s142
      %s159 = sphi 0, %s143
    $region4: #{tpu_custom_call.1} parent=1 // loop_header_branch
      %16 = sbr.rel (%p14) target = $region8
    $region5: #{tpu_custom_call.1} parent=1 // loop_body
      %s18 = ssub.s32 %s13, 1
      %s19 = ssub.s32 %s13, 2
      %s26 = sadd.s32 1, %s21
      %p27 = scmp.ge.s32.totalorder %s26, 1
      %s28 = scalar_select %p27, 0, %s26
      %s29 = sadd.s32 1, %s20
      %s30 = scalar_select %p27, %s29, %s20
      %p31 = scmp.ge.s32.totalorder %s30, 2
      %s32 = scalar_select %p31, 0, %s30
      %s33 = ssub.s32 %s20, %s32
      %s34 = ssub.s32 %s21, %s28
      %s35 = sor.u32 %s33, %s34
      %p36 = scmp.eq.s32.totalorder %s35, 0
      %s38 = sadd.s32 %s37, 1
      %s39 = scalar_select %p36, %s37, %s38
      %p42 = pneg %p36
      %p43 = scmp.eq.s32.totalorder %s13, 1
      %p44 = por %p42, %p43
      %p45 = scmp.ne.s32.totalorder %s37, %s40
      %p46 = scmp.eq.s32.totalorder %s13, 0
      %p47 = por %p45, %p46
      %p48 = scmp.ne.s32.totalorder %s37, %s40
      %p49 = scmp.eq.s32.totalorder %s18, 1
      %p50 = por %p48, %p49
      %p51 = scmp.ne.s32.totalorder %s40, %s41
      %p52 = scmp.eq.s32.totalorder %s18, 0
      %p53 = por %p51, %p52
      %p54 = scmp.ne.s32.totalorder %s40, %s41
      %p55 = scmp.eq.s32.totalorder %s19, 1
      %p56 = por %p54, %p55
      %p58 = scmp.ne.s32.totalorder %s41, %s57
      %p59 = scmp.eq.s32.totalorder %s19, 0
      %p60 = por %p58, %p59
      %s61 = sadd.s32 %s21, 1
      %s62 = smul.u32 %s61, 8
      %s63 = sadd.s32 %s28, 1
      %s64 = smul.u32 %s63, 8
      %s65 = ssub.s32 %s20, %s32
      %s66 = ssub.s32 %s62, %s64
      %s67 = sor.u32 %s65, %s66
      %p68 = scmp.eq.s32.totalorder %s67, 0
      %s70 = sadd.s32 %s69, 1
      %s71 = scalar_select %p68, %s69, %s70
      %p74 = pneg %p68
      %p75 = scmp.eq.s32.totalorder %s13, 1
      %p76 = por %p74, %p75
      %p77 = scmp.ne.s32.totalorder %s69, %s72
      %p78 = scmp.eq.s32.totalorder %s13, 0
      %p79 = por %p77, %p78
      %p80 = scmp.ne.s32.totalorder %s69, %s72
      %p81 = scmp.eq.s32.totalorder %s18, 1
      %p82 = por %p80, %p81
      %p83 = scmp.ne.s32.totalorder %s72, %s73
      %p84 = scmp.eq.s32.totalorder %s18, 0
      %p85 = por %p83, %p84
      %p86 = scmp.ne.s32.totalorder %s72, %s73
      %p87 = scmp.eq.s32.totalorder %s19, 1
      %p88 = por %p86, %p87
      %p90 = scmp.ne.s32.totalorder %s73, %s89
      %p91 = scmp.eq.s32.totalorder %s19, 0
      %p92 = por %p90, %p91
      %s94 = sadd.s32 %s93, 1
      %p97 = scmp.eq.s32.totalorder %s13, 1
      %p98 = scmp.ne.s32.totalorder %s93, %s95
      %p99 = scmp.eq.s32.totalorder %s13, 0
      %p100 = por %p98, %p99
      %p101 = scmp.ne.s32.totalorder %s93, %s95
      %p102 = scmp.eq.s32.totalorder %s18, 1
      %p103 = por %p101, %p102
      %p104 = scmp.ne.s32.totalorder %s95, %s96
      %p105 = scmp.eq.s32.totalorder %s18, 0
      %p106 = por %p104, %p105
      %p107 = scmp.ne.s32.totalorder %s95, %s96
      %p108 = scmp.eq.s32.totalorder %s19, 1
      %p109 = por %p107, %p108
      %p111 = scmp.ne.s32.totalorder %s96, %s110
      %p112 = scmp.eq.s32.totalorder %s19, 0
      %p113 = por %p111, %p112
      %s115 = sadd.s32 %s114, 1
      %p118 = scmp.eq.s32.totalorder %s13, 1
      %p119 = scmp.ne.s32.totalorder %s114, %s116
      %p120 = scmp.eq.s32.totalorder %s13, 0
      %p121 = por %p119, %p120
      %p122 = scmp.ne.s32.totalorder %s114, %s116
      %p123 = scmp.eq.s32.totalorder %s18, 1
      %p124 = por %p122, %p123
      %p125 = scmp.ne.s32.totalorder %s116, %s117
      %p126 = scmp.eq.s32.totalorder %s18, 0
      %p127 = por %p125, %p126
      %p128 = scmp.ne.s32.totalorder %s116, %s117
      %p129 = scmp.eq.s32.totalorder %s19, 1
      %p130 = por %p128, %p129
      %p132 = scmp.ne.s32.totalorder %s117, %s131
      %p133 = scmp.eq.s32.totalorder %s19, 0
      %p134 = por %p132, %p133
      %s135 = sadd.s32 %s20, %s21
      %s136 = sadd.s32 %s32, %s28
      %s137 = ssub.s32 %s135, %s136
      %p138 = scmp.eq.s32.totalorder %s137, 0
      %s140 = sadd.s32 %s139, 1
      %s141 = scalar_select %p138, %s139, %s140
      %p144 = pneg %p138
      %p145 = scmp.eq.s32.totalorder %s13, 1
      %p146 = por %p144, %p145
      %p147 = scmp.ne.s32.totalorder %s139, %s142
      %p148 = scmp.eq.s32.totalorder %s13, 0
      %p149 = por %p147, %p148
      %p150 = scmp.ne.s32.totalorder %s139, %s142
      %p151 = scmp.eq.s32.totalorder %s18, 1
      %p152 = por %p150, %p151
      %p153 = scmp.ne.s32.totalorder %s142, %s143
      %p154 = scmp.eq.s32.totalorder %s18, 0
      %p155 = por %p153, %p154
      %p156 = scmp.ne.s32.totalorder %s142, %s143
      %p157 = scmp.eq.s32.totalorder %s19, 1
      %p158 = por %p156, %p157
      %p160 = scmp.ne.s32.totalorder %s143, %s159
      %p161 = scmp.eq.s32.totalorder %s19, 0
      %p162 = por %p160, %p161
      %p163 = scmp.le.s32.totalorder 1, %s13
      %p164 = scmp.lt.s32.totalorder %s13, 3
      %p165 = pnand %p163, %p164
      %p166 = pneg %p165
      // Predicated region
      $region9: #{tpu_custom_call.1} parent=5 // pred_check
        _
      $region10: #{tpu_custom_call.1} parent=5 // pred_check_branch
        %168 = sbr.rel (%p165) target = $region12
      $region11: #{tpu_custom_call.1} parent=5 // pred_region
        %s169 = ssub.s32 %s13, 1
        // Predicated region
        $region13: #{tpu_custom_call.1} parent=11 // pred_check
          %p170 = pneg %p106
        $region14: #{tpu_custom_call.1} parent=11 // pred_check_branch
          %172 = sbr.rel (%p170) target = $region16
        $region15: #{tpu_custom_call.1} parent=11 // pred_region
          _
        $region16: #{tpu_custom_call.1} parent=11 // pred_fallthru
          _
        // Predicated region
        $region17: #{tpu_custom_call.1} parent=11 // pred_check
          %p173 = pneg %p127
        $region18: #{tpu_custom_call.1} parent=11 // pred_check_branch
          %175 = sbr.rel (%p173) target = $region20
        $region19: #{tpu_custom_call.1} parent=11 // pred_region
          _
        $region20: #{tpu_custom_call.1} parent=11 // pred_fallthru
          _
      $region12: #{tpu_custom_call.1} parent=5 // pred_fallthru
        _
      %p176 = scmp.lt.s32.totalorder %s13, 2
      // Predicated region
      $region21: #{tpu_custom_call.1} parent=5 // pred_check
        %p177 = pneg %p176
      $region22: #{tpu_custom_call.1} parent=5 // pred_check_branch
        %179 = sbr.rel (%p177) target = $region24
      $region23: #{tpu_custom_call.1} parent=5 // pred_region
        // Predicated region
        $region25: #{tpu_custom_call.1} parent=23 // pred_check
          %p180 = pneg %p47
        $region26: #{tpu_custom_call.1} parent=23 // pred_check_branch
          %182 = sbr.rel (%p180) target = $region28
        $region27: #{tpu_custom_call.1} parent=23 // pred_region
          %s183 = smul.u32 8, %s21
          %s184 = ssub.s32 9, %s183
          %p185 = scmp.lt.s32.totalorder %s184, 8
          %s186 = scalar_select %p185, %s184, 8
          %s187 = smul.u32 128, %s186
          %s188 = smul.u32 %s187, 2
          %p189 = scmp.lt.s32.totalorder %s20, 1
          %s190 = scalar_select %p189, %s20, 1
          %p191 = scmp.lt.s32.totalorder %s183, 8
          %s192 = scalar_select %p191, %s183, 8
          %s193 = smul.addr %s192, 2
          %s194 = smul.addr %s190, 18
          %s195 = sadd.s32 %s193, %s194
          %s196 = smul.addr %s195, 8
          %s197 = scalar_lea.vmem %s0, %s196
          %s198 = smul.u32 8, %s21
          %s199 = ssub.s32 9, %s198
          %p200 = scmp.lt.s32.totalorder %s199, 8
          %s201 = scalar_select %p200, %s199, 8
          %s202 = smul.u32 128, %s201
          %s203 = smul.u32 %s202, 2
        $region28: #{tpu_custom_call.1} parent=23 // pred_fallthru
          _
        // Predicated region
        $region29: #{tpu_custom_call.1} parent=23 // pred_check
          %p204 = pneg %p79
        $region30: #{tpu_custom_call.1} parent=23 // pred_check_branch
          %206 = sbr.rel (%p204) target = $region32
        $region31: #{tpu_custom_call.1} parent=23 // pred_region
          %s207 = sadd.s32 %s21, 1
          %s208 = smul.u32 %s207, 8
          %p209 = scmp.lt.s32.totalorder %s20, 1
          %s210 = scalar_select %p209, %s20, 1
          %p211 = scmp.lt.s32.totalorder %s208, 8
          %s212 = scalar_select %p211, %s208, 8
          %s213 = smul.addr %s212, 2
          %s214 = smul.addr %s210, 18
          %s215 = sadd.s32 %s213, %s214
          %s216 = smul.addr %s215, 8
          %s217 = scalar_lea.vmem %s1, %s216
          %s218 = sadd.s32 %s21, 1
          %s219 = smul.u32 %s218, 8
        $region32: #{tpu_custom_call.1} parent=23 // pred_fallthru
          _
      $region24: #{tpu_custom_call.1} parent=5 // pred_fallthru
        _
      %p220 = scmp.le.s32.totalorder 1, %s13
      %p221 = scmp.lt.s32.totalorder %s13, 3
      %p222 = pnand %p220, %p221
      %p223 = pneg %p222
      // Predicated region
      $region33: #{tpu_custom_call.1} parent=5 // pred_check
        _
      $region34: #{tpu_custom_call.1} parent=5 // pred_check_branch
        %225 = sbr.rel (%p222) target = $region36
      $region35: #{tpu_custom_call.1} parent=5 // pred_region
        %s226 = ssub.s32 %s13, 1
        %s227 = smul.u32 8, %s23
        %s228 = ssub.s32 9, %s227
        %p229 = scmp.lt.s32.totalorder %s228, 8
        %s230 = scalar_select %p229, %s228, 8
        %s231 = smul.u32 128, %s230
        %s232 = smul.u32 %s231, 2
        %p233 = scmp.lt.s32.totalorder %s22, 1
        %s234 = scalar_select %p233, %s22, 1
        %p235 = scmp.lt.s32.totalorder %s227, 8
        %s236 = scalar_select %p235, %s227, 8
        %s237 = smul.addr %s236, 2
        %s238 = smul.addr %s234, 18
        %s239 = sadd.s32 %s237, %s238
        %s240 = smul.addr %s239, 8
        %s241 = scalar_lea.vmem %s0, %s240
        %p242 = pneg %p53
        %p243 = pneg %p50
        %s244 = sadd.s32 %s23, 1
        %s245 = smul.u32 %s244, 8
        %p246 = scmp.lt.s32.totalorder %s22, 1
        %s247 = scalar_select %p246, %s22, 1
        %p248 = scmp.lt.s32.totalorder %s245, 8
        %s249 = scalar_select %p248, %s245, 8
        %s250 = smul.addr %s249, 2
        %s251 = smul.addr %s247, 18
        %s252 = sadd.s32 %s250, %s251
        %s253 = smul.addr %s252, 8
        %s254 = scalar_lea.vmem %s1, %s253
        %p255 = pneg %p85
        %p256 = pneg %p82
        %p257 = pneg %p106
        %p258 = pneg %p103
        %p259 = pneg %p127
        %p260 = pneg %p124
        %p261 = pneg %p155
        %p262 = pneg %p152
        %s263 = sand.u32 %s142, 1
        %s264 = scalar_lea.sflag [#allocation3], %s263
        %s265 = sand.u32 %s142, 1
        %s266 = smul.addr %s265, 64
        %s267 = scalar_lea.vmem [#allocation2], %s266
        %s268 = smul.u32 8, %s23
        %s269 = ssub.s32 9, %s268
        %p270 = scmp.lt.s32.totalorder %s269, 8
        %s271 = scalar_select %p270, %s269, 8
        %s272 = smul.u32 128, %s271
        %s273 = smul.u32 %s272, 2
        %p274 = scmp.lt.s32.totalorder %s22, 1
        %s275 = scalar_select %p274, %s22, 1
        %p276 = scmp.lt.s32.totalorder %s268, 8
        %s277 = scalar_select %p276, %s268, 8
        %s278 = smul.addr %s277, 2
        %s279 = smul.addr %s275, 18
        %s280 = sadd.s32 %s278, %s279
        %s281 = smul.addr %s280, 8
        %s282 = scalar_lea.vmem %s0, %s281
        %s283 = smul.u32 8, %s23
        %s284 = ssub.s32 9, %s283
        %p285 = scmp.lt.s32.totalorder %s284, 8
        %s286 = scalar_select %p285, %s284, 8
        %s287 = smul.u32 128, %s286
        %s288 = smul.u32 %s287, 2
        %s289 = sadd.s32 %s23, 1
        %s290 = smul.u32 %s289, 8
        %p291 = scmp.lt.s32.totalorder %s22, 1
        %s292 = scalar_select %p291, %s22, 1
        %p293 = scmp.lt.s32.totalorder %s290, 8
        %s294 = scalar_select %p293, %s290, 8
        %s295 = smul.addr %s294, 2
        %s296 = smul.addr %s292, 18
        %s297 = sadd.s32 %s295, %s296
        %s298 = smul.addr %s297, 8
        %s299 = scalar_lea.vmem %s1, %s298
        %s300 = sadd.s32 %s23, 1
        %s301 = smul.u32 %s300, 8
        %s302 = sadd.s32 %s22, %s23
        %s303 = smul.u32 8, %s302
        %v304 = vld [vmem:[%s282] sm:$0xff]
        %v305 = vld [vmem:[%s282 + $0x8] sm:$0x1]
        %v306 = vld [vmem:[%s282 + $0x10] sm:$0xff]
        %v307 = vld [vmem:[%s282 + $0x18] sm:$0x1]
        %v308 = vld [vmem:[%s282 + $0x20] sm:$0xff]
        %v309 = vld [vmem:[%s282 + $0x28] sm:$0x1]
        %v310 = vld [vmem:[%s282 + $0x30] sm:$0xff]
        %v311 = vld [vmem:[%s282 + $0x38] sm:$0x1]
        %v312 = vld [vmem:[%s282 + $0x40] sm:$0xff]
        %v313 = vld [vmem:[%s282 + $0x48] sm:$0x1]
        %v314 = vld [vmem:[%s282 + $0x50] sm:$0xff]
        %v315 = vld [vmem:[%s282 + $0x58] sm:$0x1]
        %v316 = vld [vmem:[%s282 + $0x60] sm:$0xff]
        %v317 = vld [vmem:[%s282 + $0x68] sm:$0x1]
        %v318 = vld [vmem:[%s282 + $0x70] sm:$0xff]
        %v319 = vld [vmem:[%s282 + $0x78] sm:$0x1]
        %v320 = vld [vmem:[%s299] sm:$0xff]
        %v321 = vld [vmem:[%s299 + $0x8] sm:$0x1]
        %v322 = vld [vmem:[%s2] sm:$0xff]
        %v323 = vld [vmem:[%s2 + $0x8] sm:$0xff]
        %vm340 = vcmask 1046528
        %v341 = vrot.slane %v304, 1
        %v342 = vrot.slane %v305, 1
        %v343 = vsel %vm340, %v341, %v342
        %v344 = vrot.slane %v306, 1
        %v345 = vrot.slane %v307, 1
        %v346 = vsel %vm340, %v344, %v345
        %v347 = vrot.slane %v308, 1
        %v348 = vrot.slane %v309, 1
        %v349 = vsel %vm340, %v347, %v348
        %v350 = vrot.slane %v310, 1
        %v351 = vrot.slane %v311, 1
        %v352 = vsel %vm340, %v350, %v351
        %v353 = vrot.slane %v312, 1
        %v354 = vrot.slane %v313, 1
        %v355 = vsel %vm340, %v353, %v354
        %v356 = vrot.slane %v314, 1
        %v357 = vrot.slane %v315, 1
        %v358 = vsel %vm340, %v356, %v357
        %v359 = vrot.slane %v316, 1
        %v360 = vrot.slane %v317, 1
        %v361 = vsel %vm340, %v359, %v360
        %v362 = vrot.slane %v318, 1
        %v363 = vrot.slane %v319, 1
        %v364 = vsel %vm340, %v362, %v363
        %v365 = vld [vmem:[%s2 + $0x10] sm:$0xf]
        %vm366 = vcmask 31744
        %v367 = vsel %vm366, %v343, 0
        %v369 = vsel %vm366, %v346, 0
        %v371 = vsel %vm366, %v349, 0
        %v373 = vsel %vm366, %v352, 0
        %v375 = vsel %vm366, %v355, 0
        %v377 = vsel %vm366, %v358, 0
        %v379 = vsel %vm366, %v361, 0
        %v381 = vsel %vm366, %v364, 0
        %vm383 = vcmask 1043456
        %v385 = vsel %vm383, %v365, 0
        %387 = vmatprep.subr.mxu0 0.0
        %388 = vmatpush1.msra.mxu0 %v385
        %389 = vmatprep.subr.mxu0 0.0
        %390 = vmatpush1.msra.mxu0 0.0
        %391 = vmatprep.subr.mxu0 0.0
        %392 = vmatpush1.msra.mxu0 0.0
        %393 = vmatprep.subr.mxu0 0.0
        %394 = vmatpush1.msra.mxu0 0.0
        %395 = vmatprep.subr.mxu0 0.0
        %396 = vmatpush1.msra.mxu0 0.0
        %397 = vmatprep.subr.mxu0 0.0
        %398 = vmatpush1.msra.mxu0 0.0
        %399 = vmatprep.subr.mxu0 0.0
        %400 = vmatpush1.msra.mxu0 0.0
        %401 = vmatprep.subr.mxu0 0.0
        %402 = vmatpush1.msra.mxu0 0.0
        %403 = vmatprep.subr.mxu0 0.0
        %404 = vmatpush1.msra.mxu0 0.0
        %405 = vmatprep.subr.mxu0 0.0
        %406 = vmatpush1.msra.mxu0 0.0
        %407 = vmatprep.subr.mxu0 0.0
        %408 = vmatpush1.msra.mxu0 0.0
        %409 = vmatprep.subr.mxu0 0.0
        %410 = vmatpush1.msra.mxu0 0.0
        %411 = vmatprep.subr.mxu0 0.0
        %412 = vmatpush1.msra.mxu0 0.0
        %413 = vmatprep.subr.mxu0 0.0
        %414 = vmatpush1.msra.mxu0 0.0
        %415 = vmatprep.subr.mxu0 0.0
        %416 = vmatpush1.msra.mxu0 0.0
        %417 = vmatprep.subr.mxu0 0.0
        %418 = vmatpush1.msra.mxu0 0.0
        %419 = vmatprep.subr.mxu0 0.0
        %420 = vmatpush1.msra.mxu0 0.0
        %421 = vmatprep.subr.mxu0 0.0
        %422 = vmatpush1.msra.mxu0 0.0
        %423 = vmatprep.subr.mxu0 0.0
        %424 = vmatpush1.msra.mxu0 0.0
        %425 = vmatprep.subr.mxu0 0.0
        %426 = vmatpush1.msra.mxu0 0.0
        %427 = vmatprep.subr.mxu0 0.0
        %428 = vmatpush1.msra.mxu0 0.0
        %429 = vmatprep.subr.mxu0 0.0
        %430 = vmatpush1.msra.mxu0 0.0
        %431 = vmatprep.subr.mxu0 0.0
        %432 = vmatpush1.msra.mxu0 0.0
        %433 = vmatprep.subr.mxu0 0.0
        %434 = vmatpush1.msra.mxu0 0.0
        %435 = vmatprep.subr.mxu0 0.0
        %436 = vmatpush1.msra.mxu0 0.0
        %437 = vmatprep.subr.mxu0 0.0
        %438 = vmatpush1.msra.mxu0 0.0
        %439 = vmatprep.subr.mxu0 0.0
        %440 = vmatpush1.msra.mxu0 0.0
        %441 = vmatprep.subr.mxu0 0.0
        %442 = vmatpush1.msra.mxu0 0.0
        %443 = vmatprep.subr.mxu0 0.0
        %444 = vmatpush1.msra.mxu0 0.0
        %445 = vmatprep.subr.mxu0 0.0
        %446 = vmatpush1.msra.mxu0 0.0
        %447 = vmatprep.subr.mxu0 0.0
        %448 = vmatpush1.msra.mxu0 0.0
        %449 = vmatprep.subr.mxu0 0.0
        %450 = vmatpush1.msra.mxu0 0.0
        %451 = vmatprep.mubr.f32.mxu0 0.0
        %452 = vmatmul.mubr.f32.gmra.mrb[0].mxu0 %v367
        %v453 = vpop.f32.mrb[0].mxu0
        %v454 = vadd.f32 0.0, %v453
        %v455 = vpop.f32.mrb[0].mxu0
        %456 = vmatprep.mubr.f32.mxu0 0.0
        %457 = vmatmul.mubr.f32.gmra.mrb[0].mxu0 %v369
        %v458 = vpop.f32.mrb[0].mxu0
        %v459 = vadd.f32 0.0, %v458
        %v460 = vpop.f32.mrb[0].mxu0
        %461 = vmatprep.mubr.f32.mxu0 0.0
        %462 = vmatmul.mubr.f32.gmra.mrb[0].mxu0 %v371
        %v463 = vpop.f32.mrb[0].mxu0
        %v464 = vadd.f32 0.0, %v463
        %v465 = vpop.f32.mrb[0].mxu0
        %466 = vmatprep.mubr.f32.mxu0 0.0
        %467 = vmatmul.mubr.f32.gmra.mrb[0].mxu0 %v373
        %v468 = vpop.f32.mrb[0].mxu0
        %v469 = vadd.f32 0.0, %v468
        %v470 = vpop.f32.mrb[0].mxu0
        %471 = vmatprep.mubr.f32.mxu0 0.0
        %472 = vmatmul.mubr.f32.gmra.mrb[0].mxu0 %v375
        %v473 = vpop.f32.mrb[0].mxu0
        %v474 = vadd.f32 0.0, %v473
        %v475 = vpop.f32.mrb[0].mxu0
        %476 = vmatprep.mubr.f32.mxu0 0.0
        %477 = vmatmul.mubr.f32.gmra.mrb[0].mxu0 %v377
        %v478 = vpop.f32.mrb[0].mxu0
        %v479 = vadd.f32 0.0, %v478
        %v480 = vpop.f32.mrb[0].mxu0
        %481 = vmatprep.mubr.f32.mxu0 0.0
        %482 = vmatmul.mubr.f32.gmra.mrb[0].mxu0 %v379
        %v483 = vpop.f32.mrb[0].mxu0
        %v484 = vadd.f32 0.0, %v483
        %v485 = vpop.f32.mrb[0].mxu0
        %486 = vmatprep.mubr.f32.mxu0 0.0
        %487 = vmatmul.mubr.f32.gmra.mrb[0].mxu0 %v381
        %v488 = vpop.f32.mrb[0].mxu0
        %v489 = vadd.f32 0.0, %v488
        %v490 = vpop.f32.mrb[0].mxu0
        %491 = vdwg.mxu0
        %vm492 = vcmask 130048
        %v493 = vsel %vm492, %v304, 0
        %v495 = vsel %vm492, %v306, 0
        %v497 = vsel %vm492, %v308, 0
        %v499 = vsel %vm492, %v310, 0
        %v501 = vsel %vm492, %v312, 0
        %v503 = vsel %vm492, %v314, 0
        %v505 = vsel %vm492, %v316, 0
        %v507 = vsel %vm492, %v318, 0
        %509 = vmatprep.subr.mxu0 0.0
        %510 = vmatpush1.msra.mxu0 %v322
        %511 = vmatprep.subr.mxu0 0.0
        %512 = vmatpush1.msra.mxu0 %v323
        %513 = vmatprep.subr.mxu0 0.0
        %514 = vmatpush1.msra.mxu0 0.0
        %515 = vmatprep.subr.mxu0 0.0
        %516 = vmatpush1.msra.mxu0 0.0
        %517 = vmatprep.subr.mxu0 0.0
        %518 = vmatpush1.msra.mxu0 0.0
        %519 = vmatprep.subr.mxu0 0.0
        %520 = vmatpush1.msra.mxu0 0.0
        %521 = vmatprep.subr.mxu0 0.0
        %522 = vmatpush1.msra.mxu0 0.0
        %523 = vmatprep.subr.mxu0 0.0
        %524 = vmatpush1.msra.mxu0 0.0
        %525 = vmatprep.subr.mxu0 0.0
        %526 = vmatpush1.msra.mxu0 0.0
        %527 = vmatprep.subr.mxu0 0.0
        %528 = vmatpush1.msra.mxu0 0.0
        %529 = vmatprep.subr.mxu0 0.0
        %530 = vmatpush1.msra.mxu0 0.0
        %531 = vmatprep.subr.mxu0 0.0
        %532 = vmatpush1.msra.mxu0 0.0
        %533 = vmatprep.subr.mxu0 0.0
        %534 = vmatpush1.msra.mxu0 0.0
        %535 = vmatprep.subr.mxu0 0.0
        %536 = vmatpush1.msra.mxu0 0.0
        %537 = vmatprep.subr.mxu0 0.0
        %538 = vmatpush1.msra.mxu0 0.0
        %539 = vmatprep.subr.mxu0 0.0
        %540 = vmatpush1.msra.mxu0 0.0
        %541 = vmatprep.subr.mxu0 0.0
        %542 = vmatpush1.msra.mxu0 0.0
        %543 = vmatprep.subr.mxu0 0.0
        %544 = vmatpush1.msra.mxu0 0.0
        %545 = vmatprep.subr.mxu0 0.0
        %546 = vmatpush1.msra.mxu0 0.0
        %547 = vmatprep.subr.mxu0 0.0
        %548 = vmatpush1.msra.mxu0 0.0
        %549 = vmatprep.subr.mxu0 0.0
        %550 = vmatpush1.msra.mxu0 0.0
        %551 = vmatprep.subr.mxu0 0.0
        %552 = vmatpush1.msra.mxu0 0.0
        %553 = vmatprep.subr.mxu0 0.0
        %554 = vmatpush1.msra.mxu0 0.0
        %555 = vmatprep.subr.mxu0 0.0
        %556 = vmatpush1.msra.mxu0 0.0
        %557 = vmatprep.subr.mxu0 0.0
        %558 = vmatpush1.msra.mxu0 0.0
        %559 = vmatprep.subr.mxu0 0.0
        %560 = vmatpush1.msra.mxu0 0.0
        %561 = vmatprep.subr.mxu0 0.0
        %562 = vmatpush1.msra.mxu0 0.0
        %563 = vmatprep.subr.mxu0 0.0
        %564 = vmatpush1.msra.mxu0 0.0
        %565 = vmatprep.subr.mxu0 0.0
        %566 = vmatpush1.msra.mxu0 0.0
        %567 = vmatprep.subr.mxu0 0.0
        %568 = vmatpush1.msra.mxu0 0.0
        %569 = vmatprep.subr.mxu0 0.0
        %570 = vmatpush1.msra.mxu0 0.0
        %571 = vmatprep.subr.mxu0 0.0
        %572 = vmatpush1.msra.mxu0 0.0
        %573 = vmatprep.mubr.f32.mxu0 0.0
        %574 = vmatmul.mubr.f32.gmra.mrb[0].mxu0 %v493
        %v575 = vpop.f32.mrb[0].mxu0
        %v576 = vadd.f32 %v454, %v575
        %v577 = vpop.f32.mrb[0].mxu0
        %578 = vmatprep.mubr.f32.mxu0 0.0
        %579 = vmatmul.mubr.f32.gmra.mrb[0].mxu0 %v495
        %v580 = vpop.f32.mrb[0].mxu0
        %v581 = vadd.f32 %v459, %v580
        %v582 = vpop.f32.mrb[0].mxu0
        %583 = vmatprep.mubr.f32.mxu0 0.0
        %584 = vmatmul.mubr.f32.gmra.mrb[0].mxu0 %v497
        %v585 = vpop.f32.mrb[0].mxu0
        %v586 = vadd.f32 %v464, %v585
        %v587 = vpop.f32.mrb[0].mxu0
        %588 = vmatprep.mubr.f32.mxu0 0.0
        %589 = vmatmul.mubr.f32.gmra.mrb[0].mxu0 %v499
        %v590 = vpop.f32.mrb[0].mxu0
        %v591 = vadd.f32 %v469, %v590
        %v592 = vpop.f32.mrb[0].mxu0
        %593 = vmatprep.mubr.f32.mxu0 0.0
        %594 = vmatmul.mubr.f32.gmra.mrb[0].mxu0 %v501
        %v595 = vpop.f32.mrb[0].mxu0
        %v596 = vadd.f32 %v474, %v595
        %v597 = vpop.f32.mrb[0].mxu0
        %598 = vmatprep.mubr.f32.mxu0 0.0
        %599 = vmatmul.mubr.f32.gmra.mrb[0].mxu0 %v503
        %v600 = vpop.f32.mrb[0].mxu0
        %v601 = vadd.f32 %v479, %v600
        %v602 = vpop.f32.mrb[0].mxu0
        %603 = vmatprep.mubr.f32.mxu0 0.0
        %604 = vmatmul.mubr.f32.gmra.mrb[0].mxu0 %v505
        %v605 = vpop.f32.mrb[0].mxu0
        %v606 = vadd.f32 %v484, %v605
        %v607 = vpop.f32.mrb[0].mxu0
        %608 = vmatprep.mubr.f32.mxu0 0.0
        %609 = vmatmul.mubr.f32.gmra.mrb[0].mxu0 %v507
        %v610 = vpop.f32.mrb[0].mxu0
        %v611 = vadd.f32 %v489, %v610
        %v612 = vpop.f32.mrb[0].mxu0
        %613 = vdwg.mxu0
        %v614 = vld [vmem:[%s2 + $0x14] sm:$0xf]
        %615 = vrot.lane.b32.xlu0 %v343, 120
        %v616 = vpop.permute.xlu0 %615
        %617 = vrot.lane.b32.xlu0 %v346, 120
        %v618 = vpop.permute.xlu0 %617
        %619 = vrot.lane.b32.xlu0 %v349, 120
        %v620 = vpop.permute.xlu0 %619
        %621 = vrot.lane.b32.xlu0 %v352, 120
        %v622 = vpop.permute.xlu0 %621
        %623 = vrot.lane.b32.xlu0 %v355, 120
        %v624 = vpop.permute.xlu0 %623
        %625 = vrot.lane.b32.xlu0 %v358, 120
        %v626 = vpop.permute.xlu0 %625
        %627 = vrot.lane.b32.xlu0 %v361, 120
        %v628 = vpop.permute.xlu0 %627
        %629 = vrot.lane.b32.xlu0 %v364, 120
        %v630 = vpop.permute.xlu0 %629
        %v631 = vsel %vm366, %v616, 0
        %v633 = vsel %vm366, %v618, 0
        %v635 = vsel %vm366, %v620, 0
        %v637 = vsel %vm366, %v622, 0
        %v639 = vsel %vm366, %v624, 0
        %v641 = vsel %vm366, %v626, 0
        %v643 = vsel %vm366, %v628, 0
        %v645 = vsel %vm366, %v630, 0
        %v648 = vsel %vm383, %v614, 0
        %650 = vmatprep.subr.mxu0 0.0
        %651 = vmatpush1.msra.mxu0 %v648
        %652 = vmatprep.subr.mxu0 0.0
        %653 = vmatpush1.msra.mxu0 0.0
        %654 = vmatprep.subr.mxu0 0.0
        %655 = vmatpush1.msra.mxu0 0.0
        %656 = vmatprep.subr.mxu0 0.0
        %657 = vmatpush1.msra.mxu0 0.0
        %658 = vmatprep.subr.mxu0 0.0
        %659 = vmatpush1.msra.mxu0 0.0
        %660 = vmatprep.subr.mxu0 0.0
        %661 = vmatpush1.msra.mxu0 0.0
        %662 = vmatprep.subr.mxu0 0.0
        %663 = vmatpush1.msra.mxu0 0.0
        %664 = vmatprep.subr.mxu0 0.0
        %665 = vmatpush1.msra.mxu0 0.0
        %666 = vmatprep.subr.mxu0 0.0
        %667 = vmatpush1.msra.mxu0 0.0
        %668 = vmatprep.subr.mxu0 0.0
        %669 = vmatpush1.msra.mxu0 0.0
        %670 = vmatprep.subr.mxu0 0.0
        %671 = vmatpush1.msra.mxu0 0.0
        %672 = vmatprep.subr.mxu0 0.0
        %673 = vmatpush1.msra.mxu0 0.0
        %674 = vmatprep.subr.mxu0 0.0
        %675 = vmatpush1.msra.mxu0 0.0
        %676 = vmatprep.subr.mxu0 0.0
        %677 = vmatpush1.msra.mxu0 0.0
        %678 = vmatprep.subr.mxu0 0.0
        %679 = vmatpush1.msra.mxu0 0.0
        %680 = vmatprep.subr.mxu0 0.0
        %681 = vmatpush1.msra.mxu0 0.0
        %682 = vmatprep.subr.mxu0 0.0
        %683 = vmatpush1.msra.mxu0 0.0
        %684 = vmatprep.subr.mxu0 0.0
        %685 = vmatpush1.msra.mxu0 0.0
        %686 = vmatprep.subr.mxu0 0.0
        %687 = vmatpush1.msra.mxu0 0.0
        %688 = vmatprep.subr.mxu0 0.0
        %689 = vmatpush1.msra.mxu0 0.0
        %690 = vmatprep.subr.mxu0 0.0
        %691 = vmatpush1.msra.mxu0 0.0
        %692 = vmatprep.subr.mxu0 0.0
        %693 = vmatpush1.msra.mxu0 0.0
        %694 = vmatprep.subr.mxu0 0.0
        %695 = vmatpush1.msra.mxu0 0.0
        %696 = vmatprep.subr.mxu0 0.0
        %697 = vmatpush1.msra.mxu0 0.0
        %698 = vmatprep.subr.mxu0 0.0
        %699 = vmatpush1.msra.mxu0 0.0
        %700 = vmatprep.subr.mxu0 0.0
        %701 = vmatpush1.msra.mxu0 0.0
        %702 = vmatprep.subr.mxu0 0.0
        %703 = vmatpush1.msra.mxu0 0.0
        %704 = vmatprep.subr.mxu0 0.0
        %705 = vmatpush1.msra.mxu0 0.0
        %706 = vmatprep.subr.mxu0 0.0
        %707 = vmatpush1.msra.mxu0 0.0
        %708 = vmatprep.subr.mxu0 0.0
        %709 = vmatpush1.msra.mxu0 0.0
        %710 = vmatprep.subr.mxu0 0.0
        %711 = vmatpush1.msra.mxu0 0.0
        %712 = vmatprep.subr.mxu0 0.0
        %713 = vmatpush1.msra.mxu0 0.0
        %714 = vmatprep.mubr.f32.mxu0 0.0
        %715 = vmatmul.mubr.f32.gmra.mrb[0].mxu0 %v631
        %v716 = vpop.f32.mrb[0].mxu0
        %v717 = vadd.f32 0.0, %v716
        %v718 = vpop.f32.mrb[0].mxu0
        %719 = vmatprep.mubr.f32.mxu0 0.0
        %720 = vmatmul.mubr.f32.gmra.mrb[0].mxu0 %v633
        %v721 = vpop.f32.mrb[0].mxu0
        %v722 = vadd.f32 0.0, %v721
        %v723 = vpop.f32.mrb[0].mxu0
        %724 = vmatprep.mubr.f32.mxu0 0.0
        %725 = vmatmul.mubr.f32.gmra.mrb[0].mxu0 %v635
        %v726 = vpop.f32.mrb[0].mxu0
        %v727 = vadd.f32 0.0, %v726
        %v728 = vpop.f32.mrb[0].mxu0
        %729 = vmatprep.mubr.f32.mxu0 0.0
        %730 = vmatmul.mubr.f32.gmra.mrb[0].mxu0 %v637
        %v731 = vpop.f32.mrb[0].mxu0
        %v732 = vadd.f32 0.0, %v731
        %v733 = vpop.f32.mrb[0].mxu0
        %734 = vmatprep.mubr.f32.mxu0 0.0
        %735 = vmatmul.mubr.f32.gmra.mrb[0].mxu0 %v639
        %v736 = vpop.f32.mrb[0].mxu0
        %v737 = vadd.f32 0.0, %v736
        %v738 = vpop.f32.mrb[0].mxu0
        %739 = vmatprep.mubr.f32.mxu0 0.0
        %740 = vmatmul.mubr.f32.gmra.mrb[0].mxu0 %v641
        %v741 = vpop.f32.mrb[0].mxu0
        %v742 = vadd.f32 0.0, %v741
        %v743 = vpop.f32.mrb[0].mxu0
        %744 = vmatprep.mubr.f32.mxu0 0.0
        %745 = vmatmul.mubr.f32.gmra.mrb[0].mxu0 %v643
        %v746 = vpop.f32.mrb[0].mxu0
        %v747 = vadd.f32 0.0, %v746
        %v748 = vpop.f32.mrb[0].mxu0
        %749 = vmatprep.mubr.f32.mxu0 0.0
        %750 = vmatmul.mubr.f32.gmra.mrb[0].mxu0 %v645
        %v751 = vpop.f32.mrb[0].mxu0
        %v752 = vadd.f32 0.0, %v751
        %v753 = vpop.f32.mrb[0].mxu0
        %754 = vdwg.mxu0
        %v755 = vadd.f32 %v576, %v717
        %v756 = vadd.f32 %v581, %v722
        %v757 = vadd.f32 %v586, %v727
        %v758 = vadd.f32 %v591, %v732
        %v759 = vadd.f32 %v596, %v737
        %v760 = vadd.f32 %v601, %v742
        %v761 = vadd.f32 %v606, %v747
        %v762 = vadd.f32 %v611, %v752
        %v763 = vld [vmem:[%s2 + $0x18] sm:$0xff]
        %vm764 = vcmask 64512
        %v765 = vsel %vm764, %v306, 0
        %v767 = vsel %vm764, %v308, 0
        %v769 = vsel %vm764, %v310, 0
        %v771 = vsel %vm764, %v312, 0
        %v773 = vsel %vm764, %v314, 0
        %v775 = vsel %vm764, %v316, 0
        %v777 = vsel %vm764, %v318, 0
        %v780 = vsel %vm764, %v320, 0
        %782 = vmatprep.subr.mxu0 0.0
        %783 = vmatpush1.msra.mxu0 %v763
        %784 = vmatprep.subr.mxu0 0.0
        %785 = vmatpush1.msra.mxu0 0.0
        %786 = vmatprep.subr.mxu0 0.0
        %787 = vmatpush1.msra.mxu0 0.0
        %788 = vmatprep.subr.mxu0 0.0
        %789 = vmatpush1.msra.mxu0 0.0
        %790 = vmatprep.subr.mxu0 0.0
        %791 = vmatpush1.msra.mxu0 0.0
        %792 = vmatprep.subr.mxu0 0.0
        %793 = vmatpush1.msra.mxu0 0.0
        %794 = vmatprep.subr.mxu0 0.0
        %795 = vmatpush1.msra.mxu0 0.0
        %796 = vmatprep.subr.mxu0 0.0
        %797 = vmatpush1.msra.mxu0 0.0
        %798 = vmatprep.subr.mxu0 0.0
        %799 = vmatpush1.msra.mxu0 0.0
        %800 = vmatprep.subr.mxu0 0.0
        %801 = vmatpush1.msra.mxu0 0.0
        %802 = vmatprep.subr.mxu0 0.0
        %803 = vmatpush1.msra.mxu0 0.0
        %804 = vmatprep.subr.mxu0 0.0
        %805 = vmatpush1.msra.mxu0 0.0
        %806 = vmatprep.subr.mxu0 0.0
        %807 = vmatpush1.msra.mxu0 0.0
        %808 = vmatprep.subr.mxu0 0.0
        %809 = vmatpush1.msra.mxu0 0.0
        %810 = vmatprep.subr.mxu0 0.0
        %811 = vmatpush1.msra.mxu0 0.0
        %812 = vmatprep.subr.mxu0 0.0
        %813 = vmatpush1.msra.mxu0 0.0
        %814 = vmatprep.subr.mxu0 0.0
        %815 = vmatpush1.msra.mxu0 0.0
        %816 = vmatprep.subr.mxu0 0.0
        %817 = vmatpush1.msra.mxu0 0.0
        %818 = vmatprep.subr.mxu0 0.0
        %819 = vmatpush1.msra.mxu0 0.0
        %820 = vmatprep.subr.mxu0 0.0
        %821 = vmatpush1.msra.mxu0 0.0
        %822 = vmatprep.subr.mxu0 0.0
        %823 = vmatpush1.msra.mxu0 0.0
        %824 = vmatprep.subr.mxu0 0.0
        %825 = vmatpush1.msra.mxu0 0.0
        %826 = vmatprep.subr.mxu0 0.0
        %827 = vmatpush1.msra.mxu0 0.0
        %828 = vmatprep.subr.mxu0 0.0
        %829 = vmatpush1.msra.mxu0 0.0
        %830 = vmatprep.subr.mxu0 0.0
        %831 = vmatpush1.msra.mxu0 0.0
        %832 = vmatprep.subr.mxu0 0.0
        %833 = vmatpush1.msra.mxu0 0.0
        %834 = vmatprep.subr.mxu0 0.0
        %835 = vmatpush1.msra.mxu0 0.0
        %836 = vmatprep.subr.mxu0 0.0
        %837 = vmatpush1.msra.mxu0 0.0
        %838 = vmatprep.subr.mxu0 0.0
        %839 = vmatpush1.msra.mxu0 0.0
        %840 = vmatprep.subr.mxu0 0.0
        %841 = vmatpush1.msra.mxu0 0.0
        %842 = vmatprep.subr.mxu0 0.0
        %843 = vmatpush1.msra.mxu0 0.0
        %844 = vmatprep.subr.mxu0 0.0
        %845 = vmatpush1.msra.mxu0 0.0
        %846 = vmatprep.mubr.f32.mxu0 0.0
        %847 = vmatmul.mubr.f32.gmra.mrb[0].mxu0 %v765
        %v848 = vpop.f32.mrb[0].mxu0
        %v849 = vadd.f32 0.0, %v848
        %v850 = vpop.f32.mrb[0].mxu0
        %851 = vmatprep.mubr.f32.mxu0 0.0
        %852 = vmatmul.mubr.f32.gmra.mrb[0].mxu0 %v767
        %v853 = vpop.f32.mrb[0].mxu0
        %v854 = vadd.f32 0.0, %v853
        %v855 = vpop.f32.mrb[0].mxu0
        %856 = vmatprep.mubr.f32.mxu0 0.0
        %857 = vmatmul.mubr.f32.gmra.mrb[0].mxu0 %v769
        %v858 = vpop.f32.mrb[0].mxu0
        %v859 = vadd.f32 0.0, %v858
        %v860 = vpop.f32.mrb[0].mxu0
        %861 = vmatprep.mubr.f32.mxu0 0.0
        %862 = vmatmul.mubr.f32.gmra.mrb[0].mxu0 %v771
        %v863 = vpop.f32.mrb[0].mxu0
        %v864 = vadd.f32 0.0, %v863
        %v865 = vpop.f32.mrb[0].mxu0
        %866 = vmatprep.mubr.f32.mxu0 0.0
        %867 = vmatmul.mubr.f32.gmra.mrb[0].mxu0 %v773
        %v868 = vpop.f32.mrb[0].mxu0
        %v869 = vadd.f32 0.0, %v868
        %v870 = vpop.f32.mrb[0].mxu0
        %871 = vmatprep.mubr.f32.mxu0 0.0
        %872 = vmatmul.mubr.f32.gmra.mrb[0].mxu0 %v775
        %v873 = vpop.f32.mrb[0].mxu0
        %v874 = vadd.f32 0.0, %v873
        %v875 = vpop.f32.mrb[0].mxu0
        %876 = vmatprep.mubr.f32.mxu0 0.0
        %877 = vmatmul.mubr.f32.gmra.mrb[0].mxu0 %v777
        %v878 = vpop.f32.mrb[0].mxu0
        %v879 = vadd.f32 0.0, %v878
        %v880 = vpop.f32.mrb[0].mxu0
        %881 = vmatprep.mubr.f32.mxu0 0.0
        %882 = vmatmul.mubr.f32.gmra.mrb[0].mxu0 %v780
        %v883 = vpop.f32.mrb[0].mxu0
        %v884 = vadd.f32 0.0, %v883
        %v885 = vpop.f32.mrb[0].mxu0
        %886 = vdwg.mxu0
        %v887 = vadd.f32 %v755, %v849
        %v888 = vadd.f32 %v756, %v854
        %v889 = vadd.f32 %v757, %v859
        %v890 = vadd.f32 %v758, %v864
        %v891 = vadd.f32 %v759, %v869
        %v892 = vadd.f32 %v760, %v874
        %v893 = vadd.f32 %v761, %v879
        %v894 = vadd.f32 %v762, %v884
        %v896 = vrot.slane %v320, 1
        %v897 = vrot.slane %v321, 1
        %v898 = vsel %vm340, %v896, %v897
        %v899 = vld [vmem:[%s2 + $0x20] sm:$0xf]
        %v900 = vsel %vm366, %v898, 0
        %v903 = vsel %vm383, %v899, 0
        %905 = vmatprep.subr.mxu0 0.0
        %906 = vmatpush1.msra.mxu0 %v903
        %907 = vmatprep.subr.mxu0 0.0
        %908 = vmatpush1.msra.mxu0 0.0
        %909 = vmatprep.subr.mxu0 0.0
        %910 = vmatpush1.msra.mxu0 0.0
        %911 = vmatprep.subr.mxu0 0.0
        %912 = vmatpush1.msra.mxu0 0.0
        %913 = vmatprep.subr.mxu0 0.0
        %914 = vmatpush1.msra.mxu0 0.0
        %915 = vmatprep.subr.mxu0 0.0
        %916 = vmatpush1.msra.mxu0 0.0
        %917 = vmatprep.subr.mxu0 0.0
        %918 = vmatpush1.msra.mxu0 0.0
        %919 = vmatprep.subr.mxu0 0.0
        %920 = vmatpush1.msra.mxu0 0.0
        %921 = vmatprep.subr.mxu0 0.0
        %922 = vmatpush1.msra.mxu0 0.0
        %923 = vmatprep.subr.mxu0 0.0
        %924 = vmatpush1.msra.mxu0 0.0
        %925 = vmatprep.subr.mxu0 0.0
        %926 = vmatpush1.msra.mxu0 0.0
        %927 = vmatprep.subr.mxu0 0.0
        %928 = vmatpush1.msra.mxu0 0.0
        %929 = vmatprep.subr.mxu0 0.0
        %930 = vmatpush1.msra.mxu0 0.0
        %931 = vmatprep.subr.mxu0 0.0
        %932 = vmatpush1.msra.mxu0 0.0
        %933 = vmatprep.subr.mxu0 0.0
        %934 = vmatpush1.msra.mxu0 0.0
        %935 = vmatprep.subr.mxu0 0.0
        %936 = vmatpush1.msra.mxu0 0.0
        %937 = vmatprep.subr.mxu0 0.0
        %938 = vmatpush1.msra.mxu0 0.0
        %939 = vmatprep.subr.mxu0 0.0
        %940 = vmatpush1.msra.mxu0 0.0
        %941 = vmatprep.subr.mxu0 0.0
        %942 = vmatpush1.msra.mxu0 0.0
        %943 = vmatprep.subr.mxu0 0.0
        %944 = vmatpush1.msra.mxu0 0.0
        %945 = vmatprep.subr.mxu0 0.0
        %946 = vmatpush1.msra.mxu0 0.0
        %947 = vmatprep.subr.mxu0 0.0
        %948 = vmatpush1.msra.mxu0 0.0
        %949 = vmatprep.subr.mxu0 0.0
        %950 = vmatpush1.msra.mxu0 0.0
        %951 = vmatprep.subr.mxu0 0.0
        %952 = vmatpush1.msra.mxu0 0.0
        %953 = vmatprep.subr.mxu0 0.0
        %954 = vmatpush1.msra.mxu0 0.0
        %955 = vmatprep.subr.mxu0 0.0
        %956 = vmatpush1.msra.mxu0 0.0
        %957 = vmatprep.subr.mxu0 0.0
        %958 = vmatpush1.msra.mxu0 0.0
        %959 = vmatprep.subr.mxu0 0.0
        %960 = vmatpush1.msra.mxu0 0.0
        %961 = vmatprep.subr.mxu0 0.0
        %962 = vmatpush1.msra.mxu0 0.0
        %963 = vmatprep.subr.mxu0 0.0
        %964 = vmatpush1.msra.mxu0 0.0
        %965 = vmatprep.subr.mxu0 0.0
        %966 = vmatpush1.msra.mxu0 0.0
        %967 = vmatprep.subr.mxu0 0.0
        %968 = vmatpush1.msra.mxu0 0.0
        %969 = vmatprep.mubr.f32.mxu0 0.0
        %970 = vmatmul.mubr.f32.gmra.mrb[0].mxu0 %v369
        %v971 = vpop.f32.mrb[0].mxu0
        %v972 = vadd.f32 0.0, %v971
        %v973 = vpop.f32.mrb[0].mxu0
        %974 = vmatprep.mubr.f32.mxu0 0.0
        %975 = vmatmul.mubr.f32.gmra.mrb[0].mxu0 %v371
        %v976 = vpop.f32.mrb[0].mxu0
        %v977 = vadd.f32 0.0, %v976
        %v978 = vpop.f32.mrb[0].mxu0
        %979 = vmatprep.mubr.f32.mxu0 0.0
        %980 = vmatmul.mubr.f32.gmra.mrb[0].mxu0 %v373
        %v981 = vpop.f32.mrb[0].mxu0
        %v982 = vadd.f32 0.0, %v981
        %v983 = vpop.f32.mrb[0].mxu0
        %984 = vmatprep.mubr.f32.mxu0 0.0
        %985 = vmatmul.mubr.f32.gmra.mrb[0].mxu0 %v375
        %v986 = vpop.f32.mrb[0].mxu0
        %v987 = vadd.f32 0.0, %v986
        %v988 = vpop.f32.mrb[0].mxu0
        %989 = vmatprep.mubr.f32.mxu0 0.0
        %990 = vmatmul.mubr.f32.gmra.mrb[0].mxu0 %v377
        %v991 = vpop.f32.mrb[0].mxu0
        %v992 = vadd.f32 0.0, %v991
        %v993 = vpop.f32.mrb[0].mxu0
        %994 = vmatprep.mubr.f32.mxu0 0.0
        %995 = vmatmul.mubr.f32.gmra.mrb[0].mxu0 %v379
        %v996 = vpop.f32.mrb[0].mxu0
        %v997 = vadd.f32 0.0, %v996
        %v998 = vpop.f32.mrb[0].mxu0
        %999 = vmatprep.mubr.f32.mxu0 0.0
        %1000 = vmatmul.mubr.f32.gmra.mrb[0].mxu0 %v381
        %v1001 = vpop.f32.mrb[0].mxu0
        %v1002 = vadd.f32 0.0, %v1001
        %v1003 = vpop.f32.mrb[0].mxu0
        %1004 = vmatprep.mubr.f32.mxu0 0.0
        %1005 = vmatmul.mubr.f32.gmra.mrb[0].mxu0 %v900
        %v1006 = vpop.f32.mrb[0].mxu0
        %v1007 = vadd.f32 0.0, %v1006
        %v1008 = vpop.f32.mrb[0].mxu0
        %1009 = vdwg.mxu0
        %v1010 = vadd.f32 %v887, %v972
        %v1011 = vadd.f32 %v888, %v977
        %v1012 = vadd.f32 %v889, %v982
        %v1013 = vadd.f32 %v890, %v987
        %v1014 = vadd.f32 %v891, %v992
        %v1015 = vadd.f32 %v892, %v997
        %v1016 = vadd.f32 %v893, %v1002
        %v1017 = vadd.f32 %v894, %v1007
        %v1018 = vld [vmem:[%s3] sm:$0x1]
        %v1020 = vlaneseq
        %v1021 = vshrl.u32 %v1020, 7
        %v1022 = vsub.s32 0, %v1021
        %v1023 = vrot.slane %v1018, %v1022
        %v1025 = vadd.f32 %v1010, %v1023
        %v1026 = vadd.f32 %v1011, %v1023
        %v1027 = vadd.f32 %v1012, %v1023
        %v1028 = vadd.f32 %v1013, %v1023
        %v1029 = vadd.f32 %v1014, %v1023
        %v1030 = vadd.f32 %v1015, %v1023
        %v1031 = vadd.f32 %v1016, %v1023
        %v1032 = vadd.f32 %v1017, %v1023
        %1033 = vst [vmem:[%s267] sm:$0xff] %v1025
        %1034 = vst [vmem:[%s267 + $0x8] sm:$0xff] %v1026
        %1035 = vst [vmem:[%s267 + $0x10] sm:$0xff] %v1027
        %1036 = vst [vmem:[%s267 + $0x18] sm:$0xff] %v1028
        %1037 = vst [vmem:[%s267 + $0x20] sm:$0xff] %v1029
        %1038 = vst [vmem:[%s267 + $0x28] sm:$0xff] %v1030
        %1039 = vst [vmem:[%s267 + $0x30] sm:$0xff] %v1031
        %1040 = vst [vmem:[%s267 + $0x38] sm:$0xff] %v1032
        %s1041 = sand.u32 %s142, 1
        %s1042 = scalar_lea.sflag [#allocation3], %s1041
        %s1043 = sand.u32 %s142, 1
        %s1044 = smul.addr %s1043, 64
        %s1045 = scalar_lea.vmem [#allocation2], %s1044
        // Predicated region
        $region37: #{tpu_custom_call.1} parent=35 // pred_check
          %p1046 = pneg %p152
        $region38: #{tpu_custom_call.1} parent=35 // pred_check_branch
          %1048 = sbr.rel (%p1046) target = $region40
        $region39: #{tpu_custom_call.1} parent=35 // pred_region
          %s1049 = sadd.s32 %s22, %s23
          %s1050 = smul.u32 8, %s1049
          %s1052 = ssub.s32 1024, 1024
          %1053 = vsyncadd %s1042, %s1052
          %s1054 = smul.addr %s1050, 128
          %s1055 = scalar_lea.hbm %s4, %s1054
          %s1056 = sshll.u32 %s1045, 4
          %s1057 = int_to_ptr.vmem [resolvable:$true] %s1056
          %1062 = dma.vmem_to_hbm [thread:$0]  %s1057, 1024, %s1055, %s1042, 128, 128, 8
        $region40: #{tpu_custom_call.1} parent=35 // pred_fallthru
          _
      $region36: #{tpu_custom_call.1} parent=5 // pred_fallthru
        _
      %p1063 = scmp.le.s32.totalorder 2, %s13
      // Predicated region
      $region41: #{tpu_custom_call.1} parent=5 // pred_check
        %p1064 = pneg %p1063
      $region42: #{tpu_custom_call.1} parent=5 // pred_check_branch
        %1066 = sbr.rel (%p1064) target = $region44
      $region43: #{tpu_custom_call.1} parent=5 // pred_region
        %s1067 = ssub.s32 %s13, 2
        // Predicated region
        $region45: #{tpu_custom_call.1} parent=43 // pred_check
          %p1068 = pneg %p158
        $region46: #{tpu_custom_call.1} parent=43 // pred_check_branch
          %1070 = sbr.rel (%p1068) target = $region48
        $region47: #{tpu_custom_call.1} parent=43 // pred_region
          %s1071 = sand.u32 %s143, 1
          %s1072 = scalar_lea.sflag [#allocation3], %s1071
          %s1073 = sand.u32 %s143, 1
          %s1074 = smul.addr %s1073, 64
          %s1075 = scalar_lea.vmem [#allocation2], %s1074
          %1076 = dma.done %s1072, 1024
        $region48: #{tpu_custom_call.1} parent=43 // pred_fallthru
          _
      $region44: #{tpu_custom_call.1} parent=5 // pred_fallthru
        _
    $region6: #{tpu_custom_call.1} parent=1 // loop_footer
      %s17 = sadd.s32 1, %s13
    $region7: #{tpu_custom_call.1} parent=1 // loop_footer_branch
      %12 = sbr.rel target = $region3
    $region8: #{tpu_custom_call.1} parent=1 // loop_exit
      _
    %1077 = vsyncpa [#allocation3], 1
    %s1078 = scalar_lea.sflag [#allocation3], 1
    %1079 = vsyncpa %s1078, 1

// kernel: tpu_custom_call.1
$region0: #{tpu_custom_call.1}
  #allocation0 [shape = 'u32[]', space=smem, size = 0x4, offset = 0x4, fixed_abs, tag = 'smem constant byte address 0x4 - core index']
  #allocation1 [shape = 'u32[144,128]{1,0:T(1,128)}', space=vmem, size = 0x12000, scoped, tag = 'internal scratch']
  %s0 = inlined_call_operand.vmem [shape: f32[2,9,9,16], index: 0, kind: input, shape index: {}]
  %s1 = inlined_call_operand.vmem [shape: f32[2,9,9,16], index: 1, kind: input, shape index: {}]
  %s2 = inlined_call_operand.vmem [shape: f32[36,128], index: 2, kind: input, shape index: {}]
  %s3 = inlined_call_operand.vmem [shape: f32[1,128], index: 3, kind: input, shape index: {}]
  %s4 = inlined_call_operand.hbm [shape: f32[128,128], index: 4, kind: output, shape index: {}]
  %s5 = sld [smem:[#allocation0]]
  $region49: #{tpu_custom_call.1} parent=0
    _
  %s7 = ssub.s32 1, %s5
  %s8 = scalar_select 0, %s7, %s5
  $region1: #{tpu_custom_call.1} parent=0
    #allocation2 [shape = 'u8[65536]{0}', space=vmem, size = 0x10000, scoped, tag = 'output window, operand 0']
    #allocation3 [shape = 's32[2]{0}', space=sflag, size = 0x8, scoped, tag = 'scoped memory for tpu_custom_call.1']
    %9 = vsyncpa [#allocation3], 0
    %s10 = scalar_lea.sflag [#allocation3], 1
    %11 = vsyncpa %s10, 0
    loop: start=0, step=1, limit=4
    $region2: #{tpu_custom_call.1} parent=1 // loop_pre_header
      _
    $region3: #{tpu_custom_call.1} parent=1 // loop_header
      %s13 = sphi 0, %s17
      %p14 = scmp.ge.s32.totalorder %s13, 4
      %s20 = sphi 0, %s32
      %s21 = sphi 0, %s28
      %s22 = sphi 0, %s20
      %s23 = sphi 0, %s21
      %s24 = sphi 0, %s22
      %s25 = sphi 0, %s23
      %s37 = sphi 0, %s39
      %s40 = sphi 0, %s37
      %s41 = sphi 0, %s40
      %s57 = sphi 0, %s41
      %s69 = sphi 0, %s71
      %s72 = sphi 0, %s69
      %s73 = sphi 0, %s72
      %s89 = sphi 0, %s73
      %s93 = sphi 0, %s93
      %s95 = sphi 0, %s93
      %s96 = sphi 0, %s95
      %s110 = sphi 0, %s96
      %s114 = sphi 0, %s114
      %s116 = sphi 0, %s114
      %s117 = sphi 0, %s116
      %s131 = sphi 0, %s117
      %s139 = sphi 0, %s141
      %s142 = sphi 0, %s139
      %s143 = sphi 0, %s142
      %s159 = sphi 0, %s143
    $region4: #{tpu_custom_call.1} parent=1 // loop_header_branch
      %16 = sbr.rel (%p14) target = $region8
    $region5: #{tpu_custom_call.1} parent=1 // loop_body
      %s18 = ssub.s32 %s13, 1
      %s19 = ssub.s32 %s13, 2
      %s26 = sadd.s32 1, %s21
      %p27 = scmp.ge.s32.totalorder %s26, 1
      %s28 = scalar_select %p27, 0, %s26
      %s29 = sadd.s32 1, %s20
      %s30 = scalar_select %p27, %s29, %s20
      %p31 = scmp.ge.s32.totalorder %s30, 2
      %s32 = scalar_select %p31, 0, %s30
      %s33 = ssub.s32 %s20, %s32
      %s34 = ssub.s32 %s21, %s28
      %s35 = sor.u32 %s33, %s34
      %p36 = scmp.eq.s32.totalorder %s35, 0
      %s38 = sadd.s32 %s37, 1
      %s39 = scalar_select %p36, %s37, %s38
      %p42 = pneg %p36
      %p43 = scmp.eq.s32.totalorder %s13, 1
      %p44 = por %p42, %p43
      %p45 = scmp.ne.s32.totalorder %s37, %s40
      %p46 = scmp.eq.s32.totalorder %s13, 0
      %p47 = por %p45, %p46
      %p48 = scmp.ne.s32.totalorder %s37, %s40
      %p49 = scmp.eq.s32.totalorder %s18, 1
      %p50 = por %p48, %p49
      %p51 = scmp.ne.s32.totalorder %s40, %s41
      %p52 = scmp.eq.s32.totalorder %s18, 0
      %p53 = por %p51, %p52
      %p54 = scmp.ne.s32.totalorder %s40, %s41
      %p55 = scmp.eq.s32.totalorder %s19, 1
      %p56 = por %p54, %p55
      %p58 = scmp.ne.s32.totalorder %s41, %s57
      %p59 = scmp.eq.s32.totalorder %s19, 0
      %p60 = por %p58, %p59
      %s61 = sadd.s32 %s21, 1
      %s62 = smul.u32 %s61, 8
      %s63 = sadd.s32 %s28, 1
      %s64 = smul.u32 %s63, 8
      %s65 = ssub.s32 %s20, %s32
      %s66 = ssub.s32 %s62, %s64
      %s67 = sor.u32 %s65, %s66
      %p68 = scmp.eq.s32.totalorder %s67, 0
      %s70 = sadd.s32 %s69, 1
      %s71 = scalar_select %p68, %s69, %s70
      %p74 = pneg %p68
      %p75 = scmp.eq.s32.totalorder %s13, 1
      %p76 = por %p74, %p75
      %p77 = scmp.ne.s32.totalorder %s69, %s72
      %p78 = scmp.eq.s32.totalorder %s13, 0
      %p79 = por %p77, %p78
      %p80 = scmp.ne.s32.totalorder %s69, %s72
      %p81 = scmp.eq.s32.totalorder %s18, 1
      %p82 = por %p80, %p81
      %p83 = scmp.ne.s32.totalorder %s72, %s73
      %p84 = scmp.eq.s32.totalorder %s18, 0
      %p85 = por %p83, %p84
      %p86 = scmp.ne.s32.totalorder %s72, %s73
      %p87 = scmp.eq.s32.totalorder %s19, 1
      %p88 = por %p86, %p87
      %p90 = scmp.ne.s32.totalorder %s73, %s89
      %p91 = scmp.eq.s32.totalorder %s19, 0
      %p92 = por %p90, %p91
      %s94 = sadd.s32 %s93, 1
      %p97 = scmp.eq.s32.totalorder %s13, 1
      %p98 = scmp.ne.s32.totalorder %s93, %s95
      %p99 = scmp.eq.s32.totalorder %s13, 0
      %p100 = por %p98, %p99
      %p101 = scmp.ne.s32.totalorder %s93, %s95
      %p102 = scmp.eq.s32.totalorder %s18, 1
      %p103 = por %p101, %p102
      %p104 = scmp.ne.s32.totalorder %s95, %s96
      %p105 = scmp.eq.s32.totalorder %s18, 0
      %p106 = por %p104, %p105
      %p107 = scmp.ne.s32.totalorder %s95, %s96
      %p108 = scmp.eq.s32.totalorder %s19, 1
      %p109 = por %p107, %p108
      %p111 = scmp.ne.s32.totalorder %s96, %s110
      %p112 = scmp.eq.s32.totalorder %s19, 0
      %p113 = por %p111, %p112
      %s115 = sadd.s32 %s114, 1
      %p118 = scmp.eq.s32.totalorder %s13, 1
      %p119 = scmp.ne.s32.totalorder %s114, %s116
      %p120 = scmp.eq.s32.totalorder %s13, 0
      %p121 = por %p119, %p120
      %p122 = scmp.ne.s32.totalorder %s114, %s116
      %p123 = scmp.eq.s32.totalorder %s18, 1
      %p124 = por %p122, %p123
      %p125 = scmp.ne.s32.totalorder %s116, %s117
      %p126 = scmp.eq.s32.totalorder %s18, 0
      %p127 = por %p125, %p126
      %p128 = scmp.ne.s32.totalorder %s116, %s117
      %p129 = scmp.eq.s32.totalorder %s19, 1
      %p130 = por %p128, %p129
      %p132 = scmp.ne.s32.totalorder %s117, %s131
      %p133 = scmp.eq.s32.totalorder %s19, 0
      %p134 = por %p132, %p133
      %s135 = sadd.s32 %s20, %s21
      %s136 = sadd.s32 %s32, %s28
      %s137 = ssub.s32 %s135, %s136
      %p138 = scmp.eq.s32.totalorder %s137, 0
      %s140 = sadd.s32 %s139, 1
      %s141 = scalar_select %p138, %s139, %s140
      %p144 = pneg %p138
      %p145 = scmp.eq.s32.totalorder %s13, 1
      %p146 = por %p144, %p145
      %p147 = scmp.ne.s32.totalorder %s139, %s142
      %p148 = scmp.eq.s32.totalorder %s13, 0
      %p149 = por %p147, %p148
      %p150 = scmp.ne.s32.totalorder %s139, %s142
      %p151 = scmp.eq.s32.totalorder %s18, 1
      %p152 = por %p150, %p151
      %p153 = scmp.ne.s32.totalorder %s142, %s143
      %p154 = scmp.eq.s32.totalorder %s18, 0
      %p155 = por %p153, %p154
      %p156 = scmp.ne.s32.totalorder %s142, %s143
      %p157 = scmp.eq.s32.totalorder %s19, 1
      %p158 = por %p156, %p157
      %p160 = scmp.ne.s32.totalorder %s143, %s159
      %p161 = scmp.eq.s32.totalorder %s19, 0
      %p162 = por %p160, %p161
      %p163 = scmp.le.s32.totalorder 1, %s13
      %p164 = scmp.lt.s32.totalorder %s13, 3
      %p165 = pnand %p163, %p164
      %p166 = pneg %p165
      // Predicated region
      $region9: #{tpu_custom_call.1} parent=5 // pred_check
        _
      $region10: #{tpu_custom_call.1} parent=5 // pred_check_branch
        %168 = sbr.rel (%p165) target = $region12
      $region11: #{tpu_custom_call.1} parent=5 // pred_region
        %s169 = ssub.s32 %s13, 1
        // Predicated region
        $region13: #{tpu_custom_call.1} parent=11 // pred_check
          %p170 = pneg %p106
        $region14: #{tpu_custom_call.1} parent=11 // pred_check_branch
          %172 = sbr.rel (%p170) target = $region16
        $region15: #{tpu_custom_call.1} parent=11 // pred_region
          _
        $region16: #{tpu_custom_call.1} parent=11 // pred_fallthru
          _
        // Predicated region
        $region17: #{tpu_custom_call.1} parent=11 // pred_check
          %p173 = pneg %p127
        $region18: #{tpu_custom_call.1} parent=11 // pred_check_branch
          %175 = sbr.rel (%p173) target = $region20
        $region19: #{tpu_custom_call.1} parent=11 // pred_region
          _
        $region20: #{tpu_custom_call.1} parent=11 // pred_fallthru
          _
      $region12: #{tpu_custom_call.1} parent=5 // pred_fallthru
        _
      %p176 = scmp.lt.s32.totalorder %s13, 2
      // Predicated region
      $region21: #{tpu_custom_call.1} parent=5 // pred_check
        %p177 = pneg %p176
      $region22: #{tpu_custom_call.1} parent=5 // pred_check_branch
        %179 = sbr.rel (%p177) target = $region24
      $region23: #{tpu_custom_call.1} parent=5 // pred_region
        // Predicated region
        $region25: #{tpu_custom_call.1} parent=23 // pred_check
          %p180 = pneg %p47
        $region26: #{tpu_custom_call.1} parent=23 // pred_check_branch
          %182 = sbr.rel (%p180) target = $region28
        $region27: #{tpu_custom_call.1} parent=23 // pred_region
          %s183 = smul.u32 8, %s21
          %s184 = ssub.s32 9, %s183
          %p185 = scmp.lt.s32.totalorder %s184, 8
          %s186 = scalar_select %p185, %s184, 8
          %s187 = smul.u32 128, %s186
          %s188 = smul.u32 %s187, 2
          %p189 = scmp.lt.s32.totalorder %s20, 1
          %s190 = scalar_select %p189, %s20, 1
          %p191 = scmp.lt.s32.totalorder %s183, 8
          %s192 = scalar_select %p191, %s183, 8
          %s193 = smul.addr %s192, 2
          %s194 = smul.addr %s190, 18
          %s195 = sadd.s32 %s193, %s194
          %s196 = smul.addr %s195, 8
          %s197 = scalar_lea.vmem %s0, %s196
          %s198 = smul.u32 8, %s21
          %s199 = ssub.s32 9, %s198
          %p200 = scmp.lt.s32.totalorder %s199, 8
          %s201 = scalar_select %p200, %s199, 8
          %s202 = smul.u32 128, %s201
          %s203 = smul.u32 %s202, 2
        $region28: #{tpu_custom_call.1} parent=23 // pred_fallthru
          _
        // Predicated region
        $region29: #{tpu_custom_call.1} parent=23 // pred_check
          %p204 = pneg %p79
        $region30: #{tpu_custom_call.1} parent=23 // pred_check_branch
          %206 = sbr.rel (%p204) target = $region32
        $region31: #{tpu_custom_call.1} parent=23 // pred_region
          %s207 = sadd.s32 %s21, 1
          %s208 = smul.u32 %s207, 8
          %p209 = scmp.lt.s32.totalorder %s20, 1
          %s210 = scalar_select %p209, %s20, 1
          %p211 = scmp.lt.s32.totalorder %s208, 8
          %s212 = scalar_select %p211, %s208, 8
          %s213 = smul.addr %s212, 2
          %s214 = smul.addr %s210, 18
          %s215 = sadd.s32 %s213, %s214
          %s216 = smul.addr %s215, 8
          %s217 = scalar_lea.vmem %s1, %s216
          %s218 = sadd.s32 %s21, 1
          %s219 = smul.u32 %s218, 8
        $region32: #{tpu_custom_call.1} parent=23 // pred_fallthru
          _
      $region24: #{tpu_custom_call.1} parent=5 // pred_fallthru
        _
      %p220 = scmp.le.s32.totalorder 1, %s13
      %p221 = scmp.lt.s32.totalorder %s13, 3
      %p222 = pnand %p220, %p221
      %p223 = pneg %p222
      // Predicated region
      $region33: #{tpu_custom_call.1} parent=5 // pred_check
        _
      $region34: #{tpu_custom_call.1} parent=5 // pred_check_branch
        %225 = sbr.rel (%p222) target = $region36
      $region35: #{tpu_custom_call.1} parent=5 // pred_region
        %s226 = ssub.s32 %s13, 1
        %s227 = smul.u32 8, %s23
        %s228 = ssub.s32 9, %s227
        %p229 = scmp.lt.s32.totalorder %s228, 8
        %s230 = scalar_select %p229, %s228, 8
        %s231 = smul.u32 128, %s230
        %s232 = smul.u32 %s231, 2
        %p233 = scmp.lt.s32.totalorder %s22, 1
        %s234 = scalar_select %p233, %s22, 1
        %p235 = scmp.lt.s32.totalorder %s227, 8
        %s236 = scalar_select %p235, %s227, 8
        %s237 = smul.addr %s236, 2
        %s238 = smul.addr %s234, 18
        %s239 = sadd.s32 %s237, %s238
        %s240 = smul.addr %s239, 8
        %s241 = scalar_lea.vmem %s0, %s240
        %p242 = pneg %p53
        %p243 = pneg %p50
        %s244 = sadd.s32 %s23, 1
        %s245 = smul.u32 %s244, 8
        %p246 = scmp.lt.s32.totalorder %s22, 1
        %s247 = scalar_select %p246, %s22, 1
        %p248 = scmp.lt.s32.totalorder %s245, 8
        %s249 = scalar_select %p248, %s245, 8
        %s250 = smul.addr %s249, 2
        %s251 = smul.addr %s247, 18
        %s252 = sadd.s32 %s250, %s251
        %s253 = smul.addr %s252, 8
        %s254 = scalar_lea.vmem %s1, %s253
        %p255 = pneg %p85
        %p256 = pneg %p82
        %p257 = pneg %p106
        %p258 = pneg %p103
        %p259 = pneg %p127
        %p260 = pneg %p124
        %p261 = pneg %p155
        %p262 = pneg %p152
        %s263 = sand.u32 %s142, 1
        %s264 = scalar_lea.sflag [#allocation3], %s263
        %s265 = sand.u32 %s142, 1
        %s266 = smul.addr %s265, 64
        %s267 = scalar_lea.vmem [#allocation2], %s266
        %s268 = smul.u32 8, %s23
        %s269 = ssub.s32 9, %s268
        %p270 = scmp.lt.s32.totalorder %s269, 8
        %s271 = scalar_select %p270, %s269, 8
        %s272 = smul.u32 128, %s271
        %s273 = smul.u32 %s272, 2
        %p274 = scmp.lt.s32.totalorder %s22, 1
        %s275 = scalar_select %p274, %s22, 1
        %p276 = scmp.lt.s32.totalorder %s268, 8
        %s277 = scalar_select %p276, %s268, 8
        %s278 = smul.addr %s277, 2
        %s279 = smul.addr %s275, 18
        %s280 = sadd.s32 %s278, %s279
        %s281 = smul.addr %s280, 8
        %s282 = scalar_lea.vmem %s0, %s281
        %s283 = smul.u32 8, %s23
        %s284 = ssub.s32 9, %s283
        %p285 = scmp.lt.s32.totalorder %s284, 8
        %s286 = scalar_select %p285, %s284, 8
        %s287 = smul.u32 128, %s286
        %s288 = smul.u32 %s287, 2
        %s289 = sadd.s32 %s23, 1
        %s290 = smul.u32 %s289, 8
        %p291 = scmp.lt.s32.totalorder %s22, 1
        %s292 = scalar_select %p291, %s22, 1
        %p293 = scmp.lt.s32.totalorder %s290, 8
        %s294 = scalar_select %p293, %s290, 8
        %s295 = smul.addr %s294, 2
        %s296 = smul.addr %s292, 18
        %s297 = sadd.s32 %s295, %s296
        %s298 = smul.addr %s297, 8
        %s299 = scalar_lea.vmem %s1, %s298
        %s300 = sadd.s32 %s23, 1
        %s301 = smul.u32 %s300, 8
        %s302 = sadd.s32 %s22, %s23
        %s303 = smul.u32 8, %s302
        %v304 = vld [vmem:[%s282] sm:$0xff]
        %v305 = vld [vmem:[%s282 + $0x8] sm:$0x1]
        %v306 = vld [vmem:[%s282 + $0x10] sm:$0xff]
        %v307 = vld [vmem:[%s282 + $0x18] sm:$0x1]
        %v308 = vld [vmem:[%s282 + $0x20] sm:$0xff]
        %v309 = vld [vmem:[%s282 + $0x28] sm:$0x1]
        %v310 = vld [vmem:[%s282 + $0x30] sm:$0xff]
        %v311 = vld [vmem:[%s282 + $0x38] sm:$0x1]
        %v312 = vld [vmem:[%s282 + $0x40] sm:$0xff]
        %v313 = vld [vmem:[%s282 + $0x48] sm:$0x1]
        %v314 = vld [vmem:[%s282 + $0x50] sm:$0xff]
        %v315 = vld [vmem:[%s282 + $0x58] sm:$0x1]
        %v316 = vld [vmem:[%s282 + $0x60] sm:$0xff]
        %v317 = vld [vmem:[%s282 + $0x68] sm:$0x1]
        %v318 = vld [vmem:[%s282 + $0x70] sm:$0xff]
        %v319 = vld [vmem:[%s282 + $0x78] sm:$0x1]
        %v320 = vld [vmem:[%s299] sm:$0xff]
        %v321 = vld [vmem:[%s299 + $0x8] sm:$0x1]
        %v322 = vld [vmem:[%s2] sm:$0xff]
        %v323 = vld [vmem:[%s2 + $0x8] sm:$0xff]
        %vm340 = vcmask 1046528
        %v341 = vrot.slane %v304, 1
        %v342 = vrot.slane %v305, 1
        %v343 = vsel %vm340, %v341, %v342
        %v344 = vrot.slane %v306, 1
        %v345 = vrot.slane %v307, 1
        %v346 = vsel %vm340, %v344, %v345
        %v347 = vrot.slane %v308, 1
        %v348 = vrot.slane %v309, 1
        %v349 = vsel %vm340, %v347, %v348
        %v350 = vrot.slane %v310, 1
        %v351 = vrot.slane %v311, 1
        %v352 = vsel %vm340, %v350, %v351
        %v353 = vrot.slane %v312, 1
        %v354 = vrot.slane %v313, 1
        %v355 = vsel %vm340, %v353, %v354
        %v356 = vrot.slane %v314, 1
        %v357 = vrot.slane %v315, 1
        %v358 = vsel %vm340, %v356, %v357
        %v359 = vrot.slane %v316, 1
        %v360 = vrot.slane %v317, 1
        %v361 = vsel %vm340, %v359, %v360
        %v362 = vrot.slane %v318, 1
        %v363 = vrot.slane %v319, 1
        %v364 = vsel %vm340, %v362, %v363
        %v365 = vld [vmem:[%s2 + $0x10] sm:$0xf]
        %vm366 = vcmask 31744
        %v367 = vsel %vm366, %v343, 0
        %v369 = vsel %vm366, %v346, 0
        %v371 = vsel %vm366, %v349, 0
        %v373 = vsel %vm366, %v352, 0
        %v375 = vsel %vm366, %v355, 0
        %v377 = vsel %vm366, %v358, 0
        %v379 = vsel %vm366, %v361, 0
        %v381 = vsel %vm366, %v364, 0
        %vm383 = vcmask 1043456
        %v385 = vsel %vm383, %v365, 0
        %387 = vmatprep.subr.mxu0 0.0
        %388 = vmatpush1.msra.mxu0 %v385
        %389 = vmatprep.subr.mxu0 0.0
        %390 = vmatpush1.msra.mxu0 0.0
        %391 = vmatprep.subr.mxu0 0.0
        %392 = vmatpush1.msra.mxu0 0.0
        %393 = vmatprep.subr.mxu0 0.0
        %394 = vmatpush1.msra.mxu0 0.0
        %395 = vmatprep.subr.mxu0 0.0
        %396 = vmatpush1.msra.mxu0 0.0
        %397 = vmatprep.subr.mxu0 0.0
        %398 = vmatpush1.msra.mxu0 0.0
        %399 = vmatprep.subr.mxu0 0.0
        %400 = vmatpush1.msra.mxu0 0.0
        %401 = vmatprep.subr.mxu0 0.0
        %402 = vmatpush1.msra.mxu0 0.0
        %403 = vmatprep.subr.mxu0 0.0
        %404 = vmatpush1.msra.mxu0 0.0
        %405 = vmatprep.subr.mxu0 0.0
        %406 = vmatpush1.msra.mxu0 0.0
        %407 = vmatprep.subr.mxu0 0.0
        %408 = vmatpush1.msra.mxu0 0.0
        %409 = vmatprep.subr.mxu0 0.0
        %410 = vmatpush1.msra.mxu0 0.0
        %411 = vmatprep.subr.mxu0 0.0
        %412 = vmatpush1.msra.mxu0 0.0
        %413 = vmatprep.subr.mxu0 0.0
        %414 = vmatpush1.msra.mxu0 0.0
        %415 = vmatprep.subr.mxu0 0.0
        %416 = vmatpush1.msra.mxu0 0.0
        %417 = vmatprep.subr.mxu0 0.0
        %418 = vmatpush1.msra.mxu0 0.0
        %419 = vmatprep.subr.mxu0 0.0
        %420 = vmatpush1.msra.mxu0 0.0
        %421 = vmatprep.subr.mxu0 0.0
        %422 = vmatpush1.msra.mxu0 0.0
        %423 = vmatprep.subr.mxu0 0.0
        %424 = vmatpush1.msra.mxu0 0.0
        %425 = vmatprep.subr.mxu0 0.0
        %426 = vmatpush1.msra.mxu0 0.0
        %427 = vmatprep.subr.mxu0 0.0
        %428 = vmatpush1.msra.mxu0 0.0
        %429 = vmatprep.subr.mxu0 0.0
        %430 = vmatpush1.msra.mxu0 0.0
        %431 = vmatprep.subr.mxu0 0.0
        %432 = vmatpush1.msra.mxu0 0.0
        %433 = vmatprep.subr.mxu0 0.0
        %434 = vmatpush1.msra.mxu0 0.0
        %435 = vmatprep.subr.mxu0 0.0
        %436 = vmatpush1.msra.mxu0 0.0
        %437 = vmatprep.subr.mxu0 0.0
        %438 = vmatpush1.msra.mxu0 0.0
        %439 = vmatprep.subr.mxu0 0.0
        %440 = vmatpush1.msra.mxu0 0.0
        %441 = vmatprep.subr.mxu0 0.0
        %442 = vmatpush1.msra.mxu0 0.0
        %443 = vmatprep.subr.mxu0 0.0
        %444 = vmatpush1.msra.mxu0 0.0
        %445 = vmatprep.subr.mxu0 0.0
        %446 = vmatpush1.msra.mxu0 0.0
        %447 = vmatprep.subr.mxu0 0.0
        %448 = vmatpush1.msra.mxu0 0.0
        %449 = vmatprep.subr.mxu0 0.0
        %450 = vmatpush1.msra.mxu0 0.0
        %451 = vmatprep.mubr.f32.mxu0 0.0
        %452 = vmatmul.mubr.f32.gmra.mrb[0].mxu0 %v367
        %v453 = vpop.f32.mrb[0].mxu0
        %v454 = vadd.f32 0.0, %v453
        %v455 = vpop.f32.mrb[0].mxu0
        %456 = vmatprep.mubr.f32.mxu0 0.0
        %457 = vmatmul.mubr.f32.gmra.mrb[0].mxu0 %v369
        %v458 = vpop.f32.mrb[0].mxu0
        %v459 = vadd.f32 0.0, %v458
        %v460 = vpop.f32.mrb[0].mxu0
        %461 = vmatprep.mubr.f32.mxu0 0.0
        %462 = vmatmul.mubr.f32.gmra.mrb[0].mxu0 %v371
        %v463 = vpop.f32.mrb[0].mxu0
        %v464 = vadd.f32 0.0, %v463
        %v465 = vpop.f32.mrb[0].mxu0
        %466 = vmatprep.mubr.f32.mxu0 0.0
        %467 = vmatmul.mubr.f32.gmra.mrb[0].mxu0 %v373
        %v468 = vpop.f32.mrb[0].mxu0
        %v469 = vadd.f32 0.0, %v468
        %v470 = vpop.f32.mrb[0].mxu0
        %471 = vmatprep.mubr.f32.mxu0 0.0
        %472 = vmatmul.mubr.f32.gmra.mrb[0].mxu0 %v375
        %v473 = vpop.f32.mrb[0].mxu0
        %v474 = vadd.f32 0.0, %v473
        %v475 = vpop.f32.mrb[0].mxu0
        %476 = vmatprep.mubr.f32.mxu0 0.0
        %477 = vmatmul.mubr.f32.gmra.mrb[0].mxu0 %v377
        %v478 = vpop.f32.mrb[0].mxu0
        %v479 = vadd.f32 0.0, %v478
        %v480 = vpop.f32.mrb[0].mxu0
        %481 = vmatprep.mubr.f32.mxu0 0.0
        %482 = vmatmul.mubr.f32.gmra.mrb[0].mxu0 %v379
        %v483 = vpop.f32.mrb[0].mxu0
        %v484 = vadd.f32 0.0, %v483
        %v485 = vpop.f32.mrb[0].mxu0
        %486 = vmatprep.mubr.f32.mxu0 0.0
        %487 = vmatmul.mubr.f32.gmra.mrb[0].mxu0 %v381
        %v488 = vpop.f32.mrb[0].mxu0
        %v489 = vadd.f32 0.0, %v488
        %v490 = vpop.f32.mrb[0].mxu0
        %491 = vdwg.mxu0
        %vm492 = vcmask 130048
        %v493 = vsel %vm492, %v304, 0
        %v495 = vsel %vm492, %v306, 0
        %v497 = vsel %vm492, %v308, 0
        %v499 = vsel %vm492, %v310, 0
        %v501 = vsel %vm492, %v312, 0
        %v503 = vsel %vm492, %v314, 0
        %v505 = vsel %vm492, %v316, 0
        %v507 = vsel %vm492, %v318, 0
        %509 = vmatprep.subr.mxu0 0.0
        %510 = vmatpush1.msra.mxu0 %v322
        %511 = vmatprep.subr.mxu0 0.0
        %512 = vmatpush1.msra.mxu0 %v323
        %513 = vmatprep.subr.mxu0 0.0
        %514 = vmatpush1.msra.mxu0 0.0
        %515 = vmatprep.subr.mxu0 0.0
        %516 = vmatpush1.msra.mxu0 0.0
        %517 = vmatprep.subr.mxu0 0.0
        %518 = vmatpush1.msra.mxu0 0.0
        %519 = vmatprep.subr.mxu0 0.0
        %520 = vmatpush1.msra.mxu0 0.0
        %521 = vmatprep.subr.mxu0 0.0
        %522 = vmatpush1.msra.mxu0 0.0
        %523 = vmatprep.subr.mxu0 0.0
        %524 = vmatpush1.msra.mxu0 0.0
        %525 = vmatprep.subr.mxu0 0.0
        %526 = vmatpush1.msra.mxu0 0.0
        %527 = vmatprep.subr.mxu0 0.0
        %528 = vmatpush1.msra.mxu0 0.0
        %529 = vmatprep.subr.mxu0 0.0
        %530 = vmatpush1.msra.mxu0 0.0
        %531 = vmatprep.subr.mxu0 0.0
        %532 = vmatpush1.msra.mxu0 0.0
        %533 = vmatprep.subr.mxu0 0.0
        %534 = vmatpush1.msra.mxu0 0.0
        %535 = vmatprep.subr.mxu0 0.0
        %536 = vmatpush1.msra.mxu0 0.0
        %537 = vmatprep.subr.mxu0 0.0
        %538 = vmatpush1.msra.mxu0 0.0
        %539 = vmatprep.subr.mxu0 0.0
        %540 = vmatpush1.msra.mxu0 0.0
        %541 = vmatprep.subr.mxu0 0.0
        %542 = vmatpush1.msra.mxu0 0.0
        %543 = vmatprep.subr.mxu0 0.0
        %544 = vmatpush1.msra.mxu0 0.0
        %545 = vmatprep.subr.mxu0 0.0
        %546 = vmatpush1.msra.mxu0 0.0
        %547 = vmatprep.subr.mxu0 0.0
        %548 = vmatpush1.msra.mxu0 0.0
        %549 = vmatprep.subr.mxu0 0.0
        %550 = vmatpush1.msra.mxu0 0.0
        %551 = vmatprep.subr.mxu0 0.0
        %552 = vmatpush1.msra.mxu0 0.0
        %553 = vmatprep.subr.mxu0 0.0
        %554 = vmatpush1.msra.mxu0 0.0
        %555 = vmatprep.subr.mxu0 0.0
        %556 = vmatpush1.msra.mxu0 0.0
        %557 = vmatprep.subr.mxu0 0.0
        %558 = vmatpush1.msra.mxu0 0.0
        %559 = vmatprep.subr.mxu0 0.0
        %560 = vmatpush1.msra.mxu0 0.0
        %561 = vmatprep.subr.mxu0 0.0
        %562 = vmatpush1.msra.mxu0 0.0
        %563 = vmatprep.subr.mxu0 0.0
        %564 = vmatpush1.msra.mxu0 0.0
        %565 = vmatprep.subr.mxu0 0.0
        %566 = vmatpush1.msra.mxu0 0.0
        %567 = vmatprep.subr.mxu0 0.0
        %568 = vmatpush1.msra.mxu0 0.0
        %569 = vmatprep.subr.mxu0 0.0
        %570 = vmatpush1.msra.mxu0 0.0
        %571 = vmatprep.subr.mxu0 0.0
        %572 = vmatpush1.msra.mxu0 0.0
        %573 = vmatprep.mubr.f32.mxu0 0.0
        %574 = vmatmul.mubr.f32.gmra.mrb[0].mxu0 %v493
        %v575 = vpop.f32.mrb[0].mxu0
        %v576 = vadd.f32 %v454, %v575
        %v577 = vpop.f32.mrb[0].mxu0
        %578 = vmatprep.mubr.f32.mxu0 0.0
        %579 = vmatmul.mubr.f32.gmra.mrb[0].mxu0 %v495
        %v580 = vpop.f32.mrb[0].mxu0
        %v581 = vadd.f32 %v459, %v580
        %v582 = vpop.f32.mrb[0].mxu0
        %583 = vmatprep.mubr.f32.mxu0 0.0
        %584 = vmatmul.mubr.f32.gmra.mrb[0].mxu0 %v497
        %v585 = vpop.f32.mrb[0].mxu0
        %v586 = vadd.f32 %v464, %v585
        %v587 = vpop.f32.mrb[0].mxu0
        %588 = vmatprep.mubr.f32.mxu0 0.0
        %589 = vmatmul.mubr.f32.gmra.mrb[0].mxu0 %v499
        %v590 = vpop.f32.mrb[0].mxu0
        %v591 = vadd.f32 %v469, %v590
        %v592 = vpop.f32.mrb[0].mxu0
        %593 = vmatprep.mubr.f32.mxu0 0.0
        %594 = vmatmul.mubr.f32.gmra.mrb[0].mxu0 %v501
        %v595 = vpop.f32.mrb[0].mxu0
        %v596 = vadd.f32 %v474, %v595
        %v597 = vpop.f32.mrb[0].mxu0
        %598 = vmatprep.mubr.f32.mxu0 0.0
        %599 = vmatmul.mubr.f32.gmra.mrb[0].mxu0 %v503
        %v600 = vpop.f32.mrb[0].mxu0
        %v601 = vadd.f32 %v479, %v600
        %v602 = vpop.f32.mrb[0].mxu0
        %603 = vmatprep.mubr.f32.mxu0 0.0
        %604 = vmatmul.mubr.f32.gmra.mrb[0].mxu0 %v505
        %v605 = vpop.f32.mrb[0].mxu0
        %v606 = vadd.f32 %v484, %v605
        %v607 = vpop.f32.mrb[0].mxu0
        %608 = vmatprep.mubr.f32.mxu0 0.0
        %609 = vmatmul.mubr.f32.gmra.mrb[0].mxu0 %v507
        %v610 = vpop.f32.mrb[0].mxu0
        %v611 = vadd.f32 %v489, %v610
        %v612 = vpop.f32.mrb[0].mxu0
        %613 = vdwg.mxu0
        %v614 = vld [vmem:[%s2 + $0x14] sm:$0xf]
        %615 = vrot.lane.b32.xlu0 %v343, 120
        %v616 = vpop.permute.xlu0 %615
        %617 = vrot.lane.b32.xlu0 %v346, 120
        %v618 = vpop.permute.xlu0 %617
        %619 = vrot.lane.b32.xlu0 %v349, 120
        %v620 = vpop.permute.xlu0 %619
        %621 = vrot.lane.b32.xlu0 %v352, 120
        %v622 = vpop.permute.xlu0 %621
        %623 = vrot.lane.b32.xlu0 %v355, 120
        %v624 = vpop.permute.xlu0 %623
        %625 = vrot.lane.b32.xlu0 %v358, 120
        %v626 = vpop.permute.xlu0 %625
        %627 = vrot.lane.b32.xlu0 %v361, 120
        %v628 = vpop.permute.xlu0 %627
        %629 = vrot.lane.b32.xlu0 %v364, 120
        %v630 = vpop.permute.xlu0 %629
        %v631 = vsel %vm366, %v616, 0
        %v633 = vsel %vm366, %v618, 0
        %v635 = vsel %vm366, %v620, 0
        %v637 = vsel %vm366, %v622, 0
        %v639 = vsel %vm366, %v624, 0
        %v641 = vsel %vm366, %v626, 0
        %v643 = vsel %vm366, %v628, 0
        %v645 = vsel %vm366, %v630, 0
        %v648 = vsel %vm383, %v614, 0
        %650 = vmatprep.subr.mxu0 0.0
        %651 = vmatpush1.msra.mxu0 %v648
        %652 = vmatprep.subr.mxu0 0.0
        %653 = vmatpush1.msra.mxu0 0.0
        %654 = vmatprep.subr.mxu0 0.0
        %655 = vmatpush1.msra.mxu0 0.0
        %656 = vmatprep.subr.mxu0 0.0
        %657 = vmatpush1.msra.mxu0 0.0
        %658 = vmatprep.subr.mxu0 0.0
        %659 = vmatpush1.msra.mxu0 0.0
        %660 = vmatprep.subr.mxu0 0.0
        %661 = vmatpush1.msra.mxu0 0.0
        %662 = vmatprep.subr.mxu0 0.0
        %663 = vmatpush1.msra.mxu0 0.0
        %664 = vmatprep.subr.mxu0 0.0
        %665 = vmatpush1.msra.mxu0 0.0
        %666 = vmatprep.subr.mxu0 0.0
        %667 = vmatpush1.msra.mxu0 0.0
        %668 = vmatprep.subr.mxu0 0.0
        %669 = vmatpush1.msra.mxu0 0.0
        %670 = vmatprep.subr.mxu0 0.0
        %671 = vmatpush1.msra.mxu0 0.0
        %672 = vmatprep.subr.mxu0 0.0
        %673 = vmatpush1.msra.mxu0 0.0
        %674 = vmatprep.subr.mxu0 0.0
        %675 = vmatpush1.msra.mxu0 0.0
        %676 = vmatprep.subr.mxu0 0.0
        %677 = vmatpush1.msra.mxu0 0.0
        %678 = vmatprep.subr.mxu0 0.0
        %679 = vmatpush1.msra.mxu0 0.0
        %680 = vmatprep.subr.mxu0 0.0
        %681 = vmatpush1.msra.mxu0 0.0
        %682 = vmatprep.subr.mxu0 0.0
        %683 = vmatpush1.msra.mxu0 0.0
        %684 = vmatprep.subr.mxu0 0.0
        %685 = vmatpush1.msra.mxu0 0.0
        %686 = vmatprep.subr.mxu0 0.0
        %687 = vmatpush1.msra.mxu0 0.0
        %688 = vmatprep.subr.mxu0 0.0
        %689 = vmatpush1.msra.mxu0 0.0
        %690 = vmatprep.subr.mxu0 0.0
        %691 = vmatpush1.msra.mxu0 0.0
        %692 = vmatprep.subr.mxu0 0.0
        %693 = vmatpush1.msra.mxu0 0.0
        %694 = vmatprep.subr.mxu0 0.0
        %695 = vmatpush1.msra.mxu0 0.0
        %696 = vmatprep.subr.mxu0 0.0
        %697 = vmatpush1.msra.mxu0 0.0
        %698 = vmatprep.subr.mxu0 0.0
        %699 = vmatpush1.msra.mxu0 0.0
        %700 = vmatprep.subr.mxu0 0.0
        %701 = vmatpush1.msra.mxu0 0.0
        %702 = vmatprep.subr.mxu0 0.0
        %703 = vmatpush1.msra.mxu0 0.0
        %704 = vmatprep.subr.mxu0 0.0
        %705 = vmatpush1.msra.mxu0 0.0
        %706 = vmatprep.subr.mxu0 0.0
        %707 = vmatpush1.msra.mxu0 0.0
        %708 = vmatprep.subr.mxu0 0.0
        %709 = vmatpush1.msra.mxu0 0.0
        %710 = vmatprep.subr.mxu0 0.0
        %711 = vmatpush1.msra.mxu0 0.0
        %712 = vmatprep.subr.mxu0 0.0
        %713 = vmatpush1.msra.mxu0 0.0
        %714 = vmatprep.mubr.f32.mxu0 0.0
        %715 = vmatmul.mubr.f32.gmra.mrb[0].mxu0 %v631
        %v716 = vpop.f32.mrb[0].mxu0
        %v717 = vadd.f32 0.0, %v716
        %v718 = vpop.f32.mrb[0].mxu0
        %719 = vmatprep.mubr.f32.mxu0 0.0
        %720 = vmatmul.mubr.f32.gmra.mrb[0].mxu0 %v633
        %v721 = vpop.f32.mrb[0].mxu0
        %v722 = vadd.f32 0.0, %v721
        %v723 = vpop.f32.mrb[0].mxu0
        %724 = vmatprep.mubr.f32.mxu0 0.0
        %725 = vmatmul.mubr.f32.gmra.mrb[0].mxu0 %v635
        %v726 = vpop.f32.mrb[0].mxu0
        %v727 = vadd.f32 0.0, %v726
        %v728 = vpop.f32.mrb[0].mxu0
        %729 = vmatprep.mubr.f32.mxu0 0.0
        %730 = vmatmul.mubr.f32.gmra.mrb[0].mxu0 %v637
        %v731 = vpop.f32.mrb[0].mxu0
        %v732 = vadd.f32 0.0, %v731
        %v733 = vpop.f32.mrb[0].mxu0
        %734 = vmatprep.mubr.f32.mxu0 0.0
        %735 = vmatmul.mubr.f32.gmra.mrb[0].mxu0 %v639
        %v736 = vpop.f32.mrb[0].mxu0
        %v737 = vadd.f32 0.0, %v736
        %v738 = vpop.f32.mrb[0].mxu0
        %739 = vmatprep.mubr.f32.mxu0 0.0
        %740 = vmatmul.mubr.f32.gmra.mrb[0].mxu0 %v641
        %v741 = vpop.f32.mrb[0].mxu0
        %v742 = vadd.f32 0.0, %v741
        %v743 = vpop.f32.mrb[0].mxu0
        %744 = vmatprep.mubr.f32.mxu0 0.0
        %745 = vmatmul.mubr.f32.gmra.mrb[0].mxu0 %v643
        %v746 = vpop.f32.mrb[0].mxu0
        %v747 = vadd.f32 0.0, %v746
        %v748 = vpop.f32.mrb[0].mxu0
        %749 = vmatprep.mubr.f32.mxu0 0.0
        %750 = vmatmul.mubr.f32.gmra.mrb[0].mxu0 %v645
        %v751 = vpop.f32.mrb[0].mxu0
        %v752 = vadd.f32 0.0, %v751
        %v753 = vpop.f32.mrb[0].mxu0
        %754 = vdwg.mxu0
        %v755 = vadd.f32 %v576, %v717
        %v756 = vadd.f32 %v581, %v722
        %v757 = vadd.f32 %v586, %v727
        %v758 = vadd.f32 %v591, %v732
        %v759 = vadd.f32 %v596, %v737
        %v760 = vadd.f32 %v601, %v742
        %v761 = vadd.f32 %v606, %v747
        %v762 = vadd.f32 %v611, %v752
        %v763 = vld [vmem:[%s2 + $0x18] sm:$0xff]
        %vm764 = vcmask 64512
        %v765 = vsel %vm764, %v306, 0
        %v767 = vsel %vm764, %v308, 0
        %v769 = vsel %vm764, %v310, 0
        %v771 = vsel %vm764, %v312, 0
        %v773 = vsel %vm764, %v314, 0
        %v775 = vsel %vm764, %v316, 0
        %v777 = vsel %vm764, %v318, 0
        %v780 = vsel %vm764, %v320, 0
        %782 = vmatprep.subr.mxu0 0.0
        %783 = vmatpush1.msra.mxu0 %v763
        %784 = vmatprep.subr.mxu0 0.0
        %785 = vmatpush1.msra.mxu0 0.0
        %786 = vmatprep.subr.mxu0 0.0
        %787 = vmatpush1.msra.mxu0 0.0
        %788 = vmatprep.subr.mxu0 0.0
        %789 = vmatpush1.msra.mxu0 0.0
        %790 = vmatprep.subr.mxu0 0.0
        %791 = vmatpush1.msra.mxu0 0.0
        %792 = vmatprep.subr.mxu0 0.0
        %793 = vmatpush1.msra.mxu0 0.0
        %794 = vmatprep.subr.mxu0 0.0
        %795 = vmatpush1.msra.mxu0 0.0
        %796 = vmatprep.subr.mxu0 0.0
        %797 = vmatpush1.msra.mxu0 0.0
        %798 = vmatprep.subr.mxu0 0.0
        %799 = vmatpush1.msra.mxu0 0.0
        %800 = vmatprep.subr.mxu0 0.0
        %801 = vmatpush1.msra.mxu0 0.0
        %802 = vmatprep.subr.mxu0 0.0
        %803 = vmatpush1.msra.mxu0 0.0
        %804 = vmatprep.subr.mxu0 0.0
        %805 = vmatpush1.msra.mxu0 0.0
        %806 = vmatprep.subr.mxu0 0.0
        %807 = vmatpush1.msra.mxu0 0.0
        %808 = vmatprep.subr.mxu0 0.0
        %809 = vmatpush1.msra.mxu0 0.0
        %810 = vmatprep.subr.mxu0 0.0
        %811 = vmatpush1.msra.mxu0 0.0
        %812 = vmatprep.subr.mxu0 0.0
        %813 = vmatpush1.msra.mxu0 0.0
        %814 = vmatprep.subr.mxu0 0.0
        %815 = vmatpush1.msra.mxu0 0.0
        %816 = vmatprep.subr.mxu0 0.0
        %817 = vmatpush1.msra.mxu0 0.0
        %818 = vmatprep.subr.mxu0 0.0
        %819 = vmatpush1.msra.mxu0 0.0
        %820 = vmatprep.subr.mxu0 0.0
        %821 = vmatpush1.msra.mxu0 0.0
        %822 = vmatprep.subr.mxu0 0.0
        %823 = vmatpush1.msra.mxu0 0.0
        %824 = vmatprep.subr.mxu0 0.0
        %825 = vmatpush1.msra.mxu0 0.0
        %826 = vmatprep.subr.mxu0 0.0
        %827 = vmatpush1.msra.mxu0 0.0
        %828 = vmatprep.subr.mxu0 0.0
        %829 = vmatpush1.msra.mxu0 0.0
        %830 = vmatprep.subr.mxu0 0.0
        %831 = vmatpush1.msra.mxu0 0.0
        %832 = vmatprep.subr.mxu0 0.0
        %833 = vmatpush1.msra.mxu0 0.0
        %834 = vmatprep.subr.mxu0 0.0
        %835 = vmatpush1.msra.mxu0 0.0
        %836 = vmatprep.subr.mxu0 0.0
        %837 = vmatpush1.msra.mxu0 0.0
        %838 = vmatprep.subr.mxu0 0.0
        %839 = vmatpush1.msra.mxu0 0.0
        %840 = vmatprep.subr.mxu0 0.0
        %841 = vmatpush1.msra.mxu0 0.0
        %842 = vmatprep.subr.mxu0 0.0
        %843 = vmatpush1.msra.mxu0 0.0
        %844 = vmatprep.subr.mxu0 0.0
        %845 = vmatpush1.msra.mxu0 0.0
        %846 = vmatprep.mubr.f32.mxu0 0.0
        %847 = vmatmul.mubr.f32.gmra.mrb[0].mxu0 %v765
        %v848 = vpop.f32.mrb[0].mxu0
        %v849 = vadd.f32 0.0, %v848
        %v850 = vpop.f32.mrb[0].mxu0
        %851 = vmatprep.mubr.f32.mxu0 0.0
        %852 = vmatmul.mubr.f32.gmra.mrb[0].mxu0 %v767
        %v853 = vpop.f32.mrb[0].mxu0
        %v854 = vadd.f32 0.0, %v853
        %v855 = vpop.f32.mrb[0].mxu0
        %856 = vmatprep.mubr.f32.mxu0 0.0
        %857 = vmatmul.mubr.f32.gmra.mrb[0].mxu0 %v769
        %v858 = vpop.f32.mrb[0].mxu0
        %v859 = vadd.f32 0.0, %v858
        %v860 = vpop.f32.mrb[0].mxu0
        %861 = vmatprep.mubr.f32.mxu0 0.0
        %862 = vmatmul.mubr.f32.gmra.mrb[0].mxu0 %v771
        %v863 = vpop.f32.mrb[0].mxu0
        %v864 = vadd.f32 0.0, %v863
        %v865 = vpop.f32.mrb[0].mxu0
        %866 = vmatprep.mubr.f32.mxu0 0.0
        %867 = vmatmul.mubr.f32.gmra.mrb[0].mxu0 %v773
        %v868 = vpop.f32.mrb[0].mxu0
        %v869 = vadd.f32 0.0, %v868
        %v870 = vpop.f32.mrb[0].mxu0
        %871 = vmatprep.mubr.f32.mxu0 0.0
        %872 = vmatmul.mubr.f32.gmra.mrb[0].mxu0 %v775
        %v873 = vpop.f32.mrb[0].mxu0
        %v874 = vadd.f32 0.0, %v873
        %v875 = vpop.f32.mrb[0].mxu0
        %876 = vmatprep.mubr.f32.mxu0 0.0
        %877 = vmatmul.mubr.f32.gmra.mrb[0].mxu0 %v777
        %v878 = vpop.f32.mrb[0].mxu0
        %v879 = vadd.f32 0.0, %v878
        %v880 = vpop.f32.mrb[0].mxu0
        %881 = vmatprep.mubr.f32.mxu0 0.0
        %882 = vmatmul.mubr.f32.gmra.mrb[0].mxu0 %v780
        %v883 = vpop.f32.mrb[0].mxu0
        %v884 = vadd.f32 0.0, %v883
        %v885 = vpop.f32.mrb[0].mxu0
        %886 = vdwg.mxu0
        %v887 = vadd.f32 %v755, %v849
        %v888 = vadd.f32 %v756, %v854
        %v889 = vadd.f32 %v757, %v859
        %v890 = vadd.f32 %v758, %v864
        %v891 = vadd.f32 %v759, %v869
        %v892 = vadd.f32 %v760, %v874
        %v893 = vadd.f32 %v761, %v879
        %v894 = vadd.f32 %v762, %v884
        %v896 = vrot.slane %v320, 1
        %v897 = vrot.slane %v321, 1
        %v898 = vsel %vm340, %v896, %v897
        %v899 = vld [vmem:[%s2 + $0x20] sm:$0xf]
        %v900 = vsel %vm366, %v898, 0
        %v903 = vsel %vm383, %v899, 0
        %905 = vmatprep.subr.mxu0 0.0
        %906 = vmatpush1.msra.mxu0 %v903
        %907 = vmatprep.subr.mxu0 0.0
        %908 = vmatpush1.msra.mxu0 0.0
        %909 = vmatprep.subr.mxu0 0.0
        %910 = vmatpush1.msra.mxu0 0.0
        %911 = vmatprep.subr.mxu0 0.0
        %912 = vmatpush1.msra.mxu0 0.0
        %913 = vmatprep.subr.mxu0 0.0
        %914 = vmatpush1.msra.mxu0 0.0
        %915 = vmatprep.subr.mxu0 0.0
        %916 = vmatpush1.msra.mxu0 0.0
        %917 = vmatprep.subr.mxu0 0.0
        %918 = vmatpush1.msra.mxu0 0.0
        %919 = vmatprep.subr.mxu0 0.0
        %920 = vmatpush1.msra.mxu0 0.0
        %921 = vmatprep.subr.mxu0 0.0
        %922 = vmatpush1.msra.mxu0 0.0
        %923 = vmatprep.subr.mxu0 0.0
        %924 = vmatpush1.msra.mxu0 0.0
        %925 = vmatprep.subr.mxu0 0.0
        %926 = vmatpush1.msra.mxu0 0.0
        %927 = vmatprep.subr.mxu0 0.0
        %928 = vmatpush1.msra.mxu0 0.0
        %929 = vmatprep.subr.mxu0 0.0
        %930 = vmatpush1.msra.mxu0 0.0
        %931 = vmatprep.subr.mxu0 0.0
        %932 = vmatpush1.msra.mxu0 0.0
        %933 = vmatprep.subr.mxu0 0.0
        %934 = vmatpush1.msra.mxu0 0.0
        %935 = vmatprep.subr.mxu0 0.0
        %936 = vmatpush1.msra.mxu0 0.0
        %937 = vmatprep.subr.mxu0 0.0
        %938 = vmatpush1.msra.mxu0 0.0
        %939 = vmatprep.subr.mxu0 0.0
        %940 = vmatpush1.msra.mxu0 0.0
        %941 = vmatprep.subr.mxu0 0.0
        %942 = vmatpush1.msra.mxu0 0.0
        %943 = vmatprep.subr.mxu0 0.0
        %944 = vmatpush1.msra.mxu0 0.0
        %945 = vmatprep.subr.mxu0 0.0
        %946 = vmatpush1.msra.mxu0 0.0
        %947 = vmatprep.subr.mxu0 0.0
        %948 = vmatpush1.msra.mxu0 0.0
        %949 = vmatprep.subr.mxu0 0.0
        %950 = vmatpush1.msra.mxu0 0.0
        %951 = vmatprep.subr.mxu0 0.0
        %952 = vmatpush1.msra.mxu0 0.0
        %953 = vmatprep.subr.mxu0 0.0
        %954 = vmatpush1.msra.mxu0 0.0
        %955 = vmatprep.subr.mxu0 0.0
        %956 = vmatpush1.msra.mxu0 0.0
        %957 = vmatprep.subr.mxu0 0.0
        %958 = vmatpush1.msra.mxu0 0.0
        %959 = vmatprep.subr.mxu0 0.0
        %960 = vmatpush1.msra.mxu0 0.0
        %961 = vmatprep.subr.mxu0 0.0
        %962 = vmatpush1.msra.mxu0 0.0
        %963 = vmatprep.subr.mxu0 0.0
        %964 = vmatpush1.msra.mxu0 0.0
        %965 = vmatprep.subr.mxu0 0.0
        %966 = vmatpush1.msra.mxu0 0.0
        %967 = vmatprep.subr.mxu0 0.0
        %968 = vmatpush1.msra.mxu0 0.0
        %969 = vmatprep.mubr.f32.mxu0 0.0
        %970 = vmatmul.mubr.f32.gmra.mrb[0].mxu0 %v369
        %v971 = vpop.f32.mrb[0].mxu0
        %v972 = vadd.f32 0.0, %v971
        %v973 = vpop.f32.mrb[0].mxu0
        %974 = vmatprep.mubr.f32.mxu0 0.0
        %975 = vmatmul.mubr.f32.gmra.mrb[0].mxu0 %v371
        %v976 = vpop.f32.mrb[0].mxu0
        %v977 = vadd.f32 0.0, %v976
        %v978 = vpop.f32.mrb[0].mxu0
        %979 = vmatprep.mubr.f32.mxu0 0.0
        %980 = vmatmul.mubr.f32.gmra.mrb[0].mxu0 %v373
        %v981 = vpop.f32.mrb[0].mxu0
        %v982 = vadd.f32 0.0, %v981
        %v983 = vpop.f32.mrb[0].mxu0
        %984 = vmatprep.mubr.f32.mxu0 0.0
        %985 = vmatmul.mubr.f32.gmra.mrb[0].mxu0 %v375
        %v986 = vpop.f32.mrb[0].mxu0
        %v987 = vadd.f32 0.0, %v986
        %v988 = vpop.f32.mrb[0].mxu0
        %989 = vmatprep.mubr.f32.mxu0 0.0
        %990 = vmatmul.mubr.f32.gmra.mrb[0].mxu0 %v377
        %v991 = vpop.f32.mrb[0].mxu0
        %v992 = vadd.f32 0.0, %v991
        %v993 = vpop.f32.mrb[0].mxu0
        %994 = vmatprep.mubr.f32.mxu0 0.0
        %995 = vmatmul.mubr.f32.gmra.mrb[0].mxu0 %v379
        %v996 = vpop.f32.mrb[0].mxu0
        %v997 = vadd.f32 0.0, %v996
        %v998 = vpop.f32.mrb[0].mxu0
        %999 = vmatprep.mubr.f32.mxu0 0.0
        %1000 = vmatmul.mubr.f32.gmra.mrb[0].mxu0 %v381
        %v1001 = vpop.f32.mrb[0].mxu0
        %v1002 = vadd.f32 0.0, %v1001
        %v1003 = vpop.f32.mrb[0].mxu0
        %1004 = vmatprep.mubr.f32.mxu0 0.0
        %1005 = vmatmul.mubr.f32.gmra.mrb[0].mxu0 %v900
        %v1006 = vpop.f32.mrb[0].mxu0
        %v1007 = vadd.f32 0.0, %v1006
        %v1008 = vpop.f32.mrb[0].mxu0
        %1009 = vdwg.mxu0
        %v1010 = vadd.f32 %v887, %v972
        %v1011 = vadd.f32 %v888, %v977
        %v1012 = vadd.f32 %v889, %v982
        %v1013 = vadd.f32 %v890, %v987
        %v1014 = vadd.f32 %v891, %v992
        %v1015 = vadd.f32 %v892, %v997
        %v1016 = vadd.f32 %v893, %v1002
        %v1017 = vadd.f32 %v894, %v1007
        %v1018 = vld [vmem:[%s3] sm:$0x1]
        %v1020 = vlaneseq
        %v1021 = vshrl.u32 %v1020, 7
        %v1022 = vsub.s32 0, %v1021
        %v1023 = vrot.slane %v1018, %v1022
        %v1025 = vadd.f32 %v1010, %v1023
        %v1026 = vadd.f32 %v1011, %v1023
        %v1027 = vadd.f32 %v1012, %v1023
        %v1028 = vadd.f32 %v1013, %v1023
        %v1029 = vadd.f32 %v1014, %v1023
        %v1030 = vadd.f32 %v1015, %v1023
        %v1031 = vadd.f32 %v1016, %v1023
        %v1032 = vadd.f32 %v1017, %v1023
        %1033 = vst [vmem:[%s267] sm:$0xff] %v1025
        %1034 = vst [vmem:[%s267 + $0x8] sm:$0xff] %v1026
        %1035 = vst [vmem:[%s267 + $0x10] sm:$0xff] %v1027
        %1036 = vst [vmem:[%s267 + $0x18] sm:$0xff] %v1028
        %1037 = vst [vmem:[%s267 + $0x20] sm:$0xff] %v1029
        %1038 = vst [vmem:[%s267 + $0x28] sm:$0xff] %v1030
        %1039 = vst [vmem:[%s267 + $0x30] sm:$0xff] %v1031
        %1040 = vst [vmem:[%s267 + $0x38] sm:$0xff] %v1032
        %s1041 = sand.u32 %s142, 1
        %s1042 = scalar_lea.sflag [#allocation3], %s1041
        %s1043 = sand.u32 %s142, 1
        %s1044 = smul.addr %s1043, 64
        %s1045 = scalar_lea.vmem [#allocation2], %s1044
        // Predicated region
        $region37: #{tpu_custom_call.1} parent=35 // pred_check
          %p1046 = pneg %p152
        $region38: #{tpu_custom_call.1} parent=35 // pred_check_branch
          %1048 = sbr.rel (%p1046) target = $region40
        $region39: #{tpu_custom_call.1} parent=35 // pred_region
          %s1049 = sadd.s32 %s22, %s23
          %s1050 = smul.u32 8, %s1049
          %s1052 = ssub.s32 1024, 1024
          %1053 = vsyncadd %s1042, %s1052
          %s1054 = smul.addr %s1050, 128
          %s1055 = scalar_lea.hbm %s4, %s1054
          %s1056 = sshll.u32 %s1045, 4
          %s1057 = int_to_ptr.vmem [resolvable:$true] %s1056
          %1062 = dma.vmem_to_hbm [thread:$0]  %s1057, 1024, %s1055, %s1042, 128, 128, 8
        $region40: #{tpu_custom_call.1} parent=35 // pred_fallthru
          _
      $region36: #{tpu_custom_call.1} parent=5 // pred_fallthru
        _
      %p1063 = scmp.le.s32.totalorder 2, %s13
      // Predicated region
      $region41: #{tpu_custom_call.1} parent=5 // pred_check
        %p1064 = pneg %p1063
      $region42: #{tpu_custom_call.1} parent=5 // pred_check_branch
        %1066 = sbr.rel (%p1064) target = $region44
      $region43: #{tpu_custom_call.1} parent=5 // pred_region
        %s1067 = ssub.s32 %s13, 2
        // Predicated region
        $region45: #{tpu_custom_call.1} parent=43 // pred_check
          %p1068 = pneg %p158
        $region46: #{tpu_custom_call.1} parent=43 // pred_check_branch
          %1070 = sbr.rel (%p1068) target = $region48
        $region47: #{tpu_custom_call.1} parent=43 // pred_region
          %s1071 = sand.u32 %s143, 1
          %s1072 = scalar_lea.sflag [#allocation3], %s1071
          %s1073 = sand.u32 %s143, 1
          %s1074 = smul.addr %s1073, 64
          %s1075 = scalar_lea.vmem [#allocation2], %s1074
          %1076 = dma.done %s1072, 1024
        $region48: #{tpu_custom_call.1} parent=43 // pred_fallthru
          _
      $region44: #{tpu_custom_call.1} parent=5 // pred_fallthru
        _
    $region6: #{tpu_custom_call.1} parent=1 // loop_footer
      %s17 = sadd.s32 1, %s13
    $region7: #{tpu_custom_call.1} parent=1 // loop_footer_branch
      %12 = sbr.rel target = $region3
    $region8: #{tpu_custom_call.1} parent=1 // loop_exit
      _
    %1077 = vsyncpa [#allocation3], 1
    %s1078 = scalar_lea.sflag [#allocation3], 1
    %1079 = vsyncpa %s1078, 1

</llo_original>
